<compile_context>
chip_gen: v7x
topology: tpu7x:2x2x1
jax: 0.10.0
libtpu: 0.0.40
codegen_flags: <defaults>
</compile_context>

<pallas_src>
import functools

import jax
import jax.numpy as jnp
import numpy as np
from jax.experimental import pallas as pl
from jax.experimental.pallas import tpu as pltpu


# ----------------------------------------------------------------------------
# Pallas kernel: B_TILE batch elements per grid step, fused
# MHA + residual + LN1 + FFN + residual + LN2.
# ----------------------------------------------------------------------------
def mha_layer_kernel(meta_ref, feat_ref,
                     wqkv_ref, bqkv_ref, wo_ref, bo_ref,
                     ln1_g_ref, ln1_b_ref,
                     w1_ref, b1_ref, w2_ref, b2_ref,
                     ln2_g_ref, ln2_b_ref,
                     out_ref,
                     *, nheads, mask_inter_choices):
    b_tile, seq, dim = feat_ref.shape
    hd = dim // nheads
    m_rows = b_tile * seq

    # ---- attention bias: one vectorized pass over the whole batch tile ----
    meta = meta_ref[...]                               # (b_tile, 1, 2) int32
    n_pad = meta[:, :, 0:1]                            # (b_tile, 1, 1)
    n_choice = meta[:, :, 1:2]                         # (b_tile, 1, 1)
    cs = seq - n_choice                                # first "choice" row/col
    i_idx = jax.lax.broadcasted_iota(jnp.int32, (b_tile, seq, seq), 1)
    j_idx = jax.lax.broadcasted_iota(jnp.int32, (b_tile, seq, seq), 2)
    allowed = (i_idx == j_idx) & (i_idx < n_pad)
    allowed = allowed | ((i_idx >= n_pad) & (j_idx >= n_pad) & (j_idx < cs))
    if mask_inter_choices:
        allowed = allowed | ((i_idx == j_idx) & (i_idx >= cs))
    else:
        allowed = allowed | ((i_idx >= cs) & (j_idx >= cs))
    # 0 where allowed, -1e30 where masked (scores stay f32, row-max subtracted)
    neg_bias = jnp.where(allowed, 0.0, -1e30).astype(jnp.float32)

    # ---- load (bf16 streamed) + fused QKV projection ----
    x3 = feat_ref[...].astype(jnp.float32)             # (b_tile, seq, dim) f32
    x2d = x3.reshape(m_rows, dim)                      # residual / LN operand
    x_bf = x2d.astype(jnp.bfloat16)

    qkv = jnp.dot(x_bf, wqkv_ref[...], preferred_element_type=jnp.float32)
    qkv = qkv + bqkv_ref[...]                          # (m_rows, 3*dim) f32
    # 1/sqrt(hd) is already folded into Wq / bq by the wrapper.
    q = qkv[:, :dim].reshape(b_tile, seq, dim).astype(jnp.bfloat16)
    k = qkv[:, dim:2 * dim].reshape(b_tile, seq, dim).astype(jnp.bfloat16)
    v = qkv[:, 2 * dim:].reshape(b_tile, seq, dim).astype(jnp.bfloat16)

    # ---- attention: static head loop (nheads is small), batched over b_tile ----
    o_heads = []
    for h in range(nheads):
        qh = q[:, :, h * hd:(h + 1) * hd]              # static lane slices
        kh = k[:, :, h * hd:(h + 1) * hd]
        vh = v[:, :, h * hd:(h + 1) * hd]
        s = jnp.einsum("bqd,bkd->bqk", qh, kh,
                       preferred_element_type=jnp.float32)   # (b_tile, seq, seq)
        s = s + neg_bias
        s = s - jnp.max(s, axis=-1, keepdims=True)
        p = jnp.exp(s)
        p = p * pl.reciprocal(jnp.sum(p, axis=-1, keepdims=True), approx=True)
        o_heads.append(jnp.einsum("bqk,bkd->bqd", p.astype(jnp.bfloat16), vh,
                                  preferred_element_type=jnp.float32))
    # single K=dim output projection instead of nheads K=hd matmuls
    o = jnp.concatenate(o_heads, axis=-1)              # (b_tile, seq, dim) f32
    mha_out = jnp.dot(o.reshape(m_rows, dim).astype(jnp.bfloat16), wo_ref[...],
                      preferred_element_type=jnp.float32) + bo_ref[...]

    # ---- residual + LayerNorm (torch semantics: biased variance, eps=1e-5) ----
    def _ln(z, gamma, beta):
        mu = jnp.mean(z, axis=-1, keepdims=True)
        var = jnp.mean((z - mu) ** 2, axis=-1, keepdims=True)
        return (z - mu) * jax.lax.rsqrt(var + 1e-5) * gamma + beta

    x1 = _ln(x2d + mha_out, ln1_g_ref[...], ln1_b_ref[...])

    # ---- feed-forward: Linear -> ReLU -> Linear (bf16 MXU, f32 accumulation) ----
    h1 = jnp.dot(x1.astype(jnp.bfloat16), w1_ref[...],
                 preferred_element_type=jnp.float32) + b1_ref[...]
    h1 = jnp.maximum(h1, 0.0)
    ff = jnp.dot(h1.astype(jnp.bfloat16), w2_ref[...],
                 preferred_element_type=jnp.float32) + b2_ref[...]

    y = _ln(x1 + ff, ln2_g_ref[...], ln2_b_ref[...])
    out_ref[...] = y.reshape(b_tile, seq, dim)


# ----------------------------------------------------------------------------
# Tiling heuristics
# ----------------------------------------------------------------------------
def _num_tensorcores():
    """2 for megacore-style chips (v7x / v4-class), else 1.  Best-effort."""
    try:
        kind = jax.devices()[0].device_kind.lower()
    except Exception:
        return 1
    return 2 if any(t in kind for t in ("v7", "7x", "v4", "v5p")) else 1


def _pick_b_tile(bs, seq, *, min_steps=1, row_target=2048):
    """Largest divisor of bs with b_tile*seq <= row_target, keeping >= min_steps
    grid steps when possible (min_steps=2 only on multi-TensorCore chips).
    Degrades gracefully (b_tile=1) for awkward batch sizes — perf cliff only."""
    target = max(1, row_target // max(seq, 1))
    cands = [c for c in range(1, bs + 1)
             if bs % c == 0 and c <= target and bs // c >= min_steps]
    if not cands:
        cands = [c for c in range(1, bs + 1) if bs % c == 0 and c <= target]
    return max(cands)


# ----------------------------------------------------------------------------
# Wrapper
# ----------------------------------------------------------------------------
def mha_layer(feat, n_pad_lefts, n_choices, params, *, nheads=4,
              mask_inter_choices=False, b_tile=None):
    bs, seq, dim = feat.shape
    hd = dim // nheads
    if b_tile is None:
        b_tile = _pick_b_tile(bs, seq, min_steps=min(bs, _num_tensorcores()))
    assert bs % b_tile == 0

    scale = 1.0 / float(np.sqrt(hd))
    # One-time wrapper-side weight transforms (free, outside the kernel):
    #  * fold the 1/sqrt(hd) query scale into Wq / bq,
    #  * fuse Q/K/V into a single (dim, 3*dim) projection,
    #  * store matmul weights in bf16 (biases / LN params stay f32).
    wqkv = jnp.concatenate(
        [params["wq_t"] * scale, params["wk_t"], params["wv_t"]], axis=1
    ).astype(jnp.bfloat16)
    bqkv = jnp.concatenate(
        [params["bq"] * scale, params["bk"], params["bv"]], axis=1
    ).astype(jnp.float32)

    weights = [
        wqkv, bqkv,
        params["wo_t"].astype(jnp.bfloat16), params["bo"].astype(jnp.float32),
        params["ln1_g"].astype(jnp.float32), params["ln1_b"].astype(jnp.float32),
        params["w1_t"].astype(jnp.bfloat16), params["b1"].astype(jnp.float32),
        params["w2_t"].astype(jnp.bfloat16), params["b2"].astype(jnp.float32),
        params["ln2_g"].astype(jnp.float32), params["ln2_b"].astype(jnp.float32),
    ]

    # Per-batch (n_pad_left, n_choice) packed into one small int32 array; trailing
    # (1, 2) dims always equal the full array dims, so any b_tile is a legal block.
    meta = jnp.stack([n_pad_lefts.astype(jnp.int32),
                      n_choices.astype(jnp.int32)], axis=-1).reshape(bs, 1, 2)

    def wspec(a):
        nd = a.ndim
        return pl.BlockSpec(a.shape, lambda g, _nd=nd: (0,) * _nd)

    grid_spec = pltpu.PrefetchScalarGridSpec(
        num_scalar_prefetch=0,
        grid=(bs // b_tile,),
        in_specs=[pl.BlockSpec((b_tile, 1, 2), lambda g: (g, 0, 0)),
                  pl.BlockSpec((b_tile, seq, dim), lambda g: (g, 0, 0))]
                 + [wspec(a) for a in weights],
        out_specs=pl.BlockSpec((b_tile, seq, dim), lambda g: (g, 0, 0)),
    )

    # Right-sized VMEM budget: double-buffered I/O blocks + f32 temporaries +
    # lane-padded (b_tile, seq, seq) attention tensors, with 2x margin, clamped
    # to 16..32 MiB (well under v7x's 64 MiB per TensorCore).
    blk_bytes = 2 * b_tile * seq * dim * (2 + 4)       # bf16 in + f32 out, x2 bufs
    blk_bytes += 2 * b_tile * 8 * 128 * 4              # padded meta block, x2 bufs
    interm_bytes = 12 * b_tile * seq * dim * 4         # f32 row temporaries
    score_bytes = 8 * b_tile * seq * 128 * 4           # lane-padded (b,seq,seq) temps
    vmem_limit = int(min(32 << 20,
                         max(16 << 20, 2 * (blk_bytes + interm_bytes + score_bytes))))

    kernel = functools.partial(mha_layer_kernel, nheads=nheads,
                               mask_inter_choices=mask_inter_choices)
    return pl.pallas_call(
        kernel,
        out_shape=jax.ShapeDtypeStruct((bs, seq, dim), jnp.float32),
        grid_spec=grid_spec,
        compiler_params=pltpu.CompilerParams(
            dimension_semantics=("parallel",),
            vmem_limit_bytes=vmem_limit),
    )(meta, feat.astype(jnp.bfloat16), *weights)


# ----------------------------------------------------------------------------
# Mask construction for the reference (vectorized PyTorch double loop).
# Returns float32, 1.0 == masked (not allowed), 0.0 == allowed.
# ----------------------------------------------------------------------------
def make_mask(n_pad_lefts, n_choices, seq, mask_inter_choices=False):
    n_pad = n_pad_lefts.astype(jnp.int32)[:, None, None]
    n_choice = n_choices.astype(jnp.int32)[:, None, None]
    i = jnp.arange(seq, dtype=jnp.int32)[None, :, None]
    j = jnp.arange(seq, dtype=jnp.int32)[None, None, :]
    choice_start = seq - n_choice
    allowed = (i == j) & (i < n_pad)
    allowed = allowed | ((i >= n_pad) & (j >= n_pad) & (j < choice_start))
    if mask_inter_choices:
        allowed = allowed | ((i == j) & (i >= choice_start))
    else:
        allowed = allowed | ((i >= choice_start) & (j >= choice_start))
    return (~allowed).astype(jnp.float32)


# ----------------------------------------------------------------------------
# Pure-JAX reference mirroring the kernel's mixed precision policy
# (bf16-streamed feat, bf16 MXU operands, f32 accumulation, f32 softmax / LN).
# ----------------------------------------------------------------------------
def reference(feat, n_pad_lefts, n_choices, params, *, nheads=4,
              mask_inter_choices=False):
    bs, seq, dim = feat.shape
    hd = dim // nheads
    bf, f32 = jnp.bfloat16, jnp.float32
    feat = feat.astype(bf).astype(f32)          # mirror bf16 input streaming
    mask = make_mask(n_pad_lefts, n_choices, seq, mask_inter_choices)

    def mm(a, b):
        return jnp.dot(a.astype(bf), b.astype(bf), preferred_element_type=f32)

    q = mm(feat, params["wq_t"]) + params["bq"]
    k = mm(feat, params["wk_t"]) + params["bk"]
    v = mm(feat, params["wv_t"]) + params["bv"]

    def heads(t):
        return t.reshape(bs, seq, nheads, hd).transpose(0, 2, 1, 3)

    qh = heads(q) * (1.0 / float(np.sqrt(hd)))
    kh, vh = heads(k), heads(v)
    s = jnp.einsum("bhqd,bhkd->bhqk", qh.astype(bf), kh.astype(bf),
                   preferred_element_type=f32)
    s = s + mask[:, None] * (-1e30)
    p = jax.nn.softmax(s, axis=-1)
    o = jnp.einsum("bhqk,bhkd->bhqd", p.astype(bf), vh.astype(bf),
                   preferred_element_type=f32)
    o = o.transpose(0, 2, 1, 3).reshape(bs, seq, dim)
    mha_out = mm(o, params["wo_t"]) + params["bo"]

    def ln(x, g, b):
        mu = jnp.mean(x, axis=-1, keepdims=True)
        var = jnp.mean((x - mu) ** 2, axis=-1, keepdims=True)
        return (x - mu) / jnp.sqrt(var + 1e-5) * g + b

    x1 = ln(feat + mha_out, params["ln1_g"], params["ln1_b"])
    h1 = jnp.maximum(mm(x1, params["w1_t"]) + params["b1"], 0.0)
    ff = mm(h1, params["w2_t"]) + params["b2"]
    return ln(x1 + ff, params["ln2_g"], params["ln2_b"])


# ----------------------------------------------------------------------------
# Main
# ----------------------------------------------------------------------------
if __name__ == "__main__":
    bs, seq, dim, ffdim, nheads = 2, 8, 32, 64, 4

    key = jax.random.PRNGKey(0)
    keys = jax.random.split(key, 13)

    feat = jax.random.normal(keys[0], (bs, seq, dim), dtype=jnp.float32)
    n_pad_lefts = jnp.array([1, 2], dtype=jnp.int32)
    n_choices = jnp.array([2, 3], dtype=jnp.int32)

    def w(k, shape, scale=0.1):
        return (scale * jax.random.normal(k, shape)).astype(jnp.float32)

    # Deterministic synthetic parameters (shapes from nn.MultiheadAttention /
    # nn.LayerNorm / nn.Linear in __init__).  Weight matrices stored transposed
    # so the forward computes x @ W^T + b as x @ W_t.
    params = {
        "wq_t": w(keys[1], (dim, dim)),   "bq": w(keys[2], (1, dim), 0.05),
        "wk_t": w(keys[3], (dim, dim)),   "bk": w(keys[4], (1, dim), 0.05),
        "wv_t": w(keys[5], (dim, dim)),   "bv": w(keys[6], (1, dim), 0.05),
        "wo_t": w(keys[7], (dim, dim)),   "bo": w(keys[8], (1, dim), 0.05),
        "ln1_g": jnp.ones((1, dim), jnp.float32),
        "ln1_b": jnp.zeros((1, dim), jnp.float32),
        "w1_t": w(keys[9], (dim, ffdim)), "b1": w(keys[10], (1, ffdim), 0.05),
        "w2_t": w(keys[11], (ffdim, dim)), "b2": w(keys[12], (1, dim), 0.05),
        "ln2_g": jnp.ones((1, dim), jnp.float32),
        "ln2_b": jnp.zeros((1, dim), jnp.float32),
    }

    out = mha_layer(feat, n_pad_lefts, n_choices, params, nheads=nheads)
    out = jax.block_until_ready(out)

    ref = reference(feat, n_pad_lefts, n_choices, params, nheads=nheads)
    # bf16 streamed input + bf16 MXU operands + approx reciprocal ->
    # compare at mixed-precision tolerance.
    np.testing.assert_allclose(np.asarray(out), np.asarray(ref), rtol=1e-2, atol=1e-2)

    # TODO(synk): self.attn_weights (per-head attention probabilities) is a side
    # attribute, not part of the forward return value, so the kernel does not emit it.
    print("KERNEL_OK")
</pallas_src>

<mosaic_0001>
module attributes {stable_mosaic.version = 11 : i64} {
  func.func @mha_layer_kernel(%arg0: i32, %arg1: memref<2x1x2xi32, #tpu.memory_space<vmem>>, %arg2: memref<2x8x32xbf16, #tpu.memory_space<vmem>>, %arg3: memref<32x96xbf16, #tpu.memory_space<vmem>>, %arg4: memref<1x96xf32, #tpu.memory_space<vmem>>, %arg5: memref<32x32xbf16, #tpu.memory_space<vmem>>, %arg6: memref<1x32xf32, #tpu.memory_space<vmem>>, %arg7: memref<1x32xf32, #tpu.memory_space<vmem>>, %arg8: memref<1x32xf32, #tpu.memory_space<vmem>>, %arg9: memref<32x64xbf16, #tpu.memory_space<vmem>>, %arg10: memref<1x64xf32, #tpu.memory_space<vmem>>, %arg11: memref<64x32xbf16, #tpu.memory_space<vmem>>, %arg12: memref<1x32xf32, #tpu.memory_space<vmem>>, %arg13: memref<1x32xf32, #tpu.memory_space<vmem>>, %arg14: memref<1x32xf32, #tpu.memory_space<vmem>>, %arg15: memref<2x8x32xf32, #tpu.memory_space<vmem>>) attributes {dimension_semantics = [#tpu.dimension_semantics<parallel>], iteration_bounds = array<i64: 1>, scalar_prefetch = 0 : i64, scratch_operands = 0 : i64, tpu.core_type = #tpu.core_type<tc>, window_params = [{transform_indices = @transform_0, window_bounds = array<i64: 2, 1, 2>}, {transform_indices = @transform_1, window_bounds = array<i64: 2, 8, 32>}, {pipeline_mode = #tpu.pipeline_mode<synchronous>, transform_indices = @transform_2, window_bounds = array<i64: 32, 96>}, {pipeline_mode = #tpu.pipeline_mode<synchronous>, transform_indices = @transform_3, window_bounds = array<i64: 1, 96>}, {pipeline_mode = #tpu.pipeline_mode<synchronous>, transform_indices = @transform_4, window_bounds = array<i64: 32, 32>}, {pipeline_mode = #tpu.pipeline_mode<synchronous>, transform_indices = @transform_5, window_bounds = array<i64: 1, 32>}, {pipeline_mode = #tpu.pipeline_mode<synchronous>, transform_indices = @transform_6, window_bounds = array<i64: 1, 32>}, {pipeline_mode = #tpu.pipeline_mode<synchronous>, transform_indices = @transform_7, window_bounds = array<i64: 1, 32>}, {pipeline_mode = #tpu.pipeline_mode<synchronous>, transform_indices = @transform_8, window_bounds = array<i64: 32, 64>}, {pipeline_mode = #tpu.pipeline_mode<synchronous>, transform_indices = @transform_9, window_bounds = array<i64: 1, 64>}, {pipeline_mode = #tpu.pipeline_mode<synchronous>, transform_indices = @transform_10, window_bounds = array<i64: 64, 32>}, {pipeline_mode = #tpu.pipeline_mode<synchronous>, transform_indices = @transform_11, window_bounds = array<i64: 1, 32>}, {pipeline_mode = #tpu.pipeline_mode<synchronous>, transform_indices = @transform_12, window_bounds = array<i64: 1, 32>}, {pipeline_mode = #tpu.pipeline_mode<synchronous>, transform_indices = @transform_13, window_bounds = array<i64: 1, 32>}, {transform_indices = @transform_14, window_bounds = array<i64: 2, 8, 32>}]} {
    %c0 = arith.constant 0 : index
    %c0_0 = arith.constant 0 : index
    %c0_1 = arith.constant 0 : index
    %0 = vector.load %arg1[%c0, %c0_0, %c0_1] : memref<2x1x2xi32, #tpu.memory_space<vmem>>, vector<2x1x2xi32>
    %1 = vector.extract_strided_slice %0 {offsets = [0, 0, 0], sizes = [2, 1, 1], strides = [1, 1, 1]} : vector<2x1x2xi32> to vector<2x1x1xi32>
    %2 = vector.extract_strided_slice %0 {offsets = [0, 0, 1], sizes = [2, 1, 1], strides = [1, 1, 1]} : vector<2x1x2xi32> to vector<2x1x1xi32>
    %c8_i32 = arith.constant 8 : i32
    %3 = vector.broadcast %c8_i32 : i32 to vector<2x1x1xi32>
    %4 = arith.subi %3, %2 : vector<2x1x1xi32>
    %5 = tpu.iota {dimensions = array<i32: 1>} : vector<2x8x8xi32>
    %6 = tpu.iota {dimensions = array<i32: 2>} : vector<2x8x8xi32>
    %7 = arith.cmpi eq, %5, %6 : vector<2x8x8xi32>
    %8 = vector.broadcast %1 : vector<2x1x1xi32> to vector<2x8x8xi32>
    %9 = arith.cmpi slt, %5, %8 : vector<2x8x8xi32>
    %10 = arith.andi %7, %9 : vector<2x8x8xi1>
    %11 = vector.broadcast %1 : vector<2x1x1xi32> to vector<2x8x8xi32>
    %12 = arith.cmpi sge, %5, %11 : vector<2x8x8xi32>
    %13 = vector.broadcast %1 : vector<2x1x1xi32> to vector<2x8x8xi32>
    %14 = arith.cmpi sge, %6, %13 : vector<2x8x8xi32>
    %15 = arith.andi %12, %14 : vector<2x8x8xi1>
    %16 = vector.broadcast %4 : vector<2x1x1xi32> to vector<2x8x8xi32>
    %17 = arith.cmpi slt, %6, %16 : vector<2x8x8xi32>
    %18 = arith.andi %15, %17 : vector<2x8x8xi1>
    %19 = arith.ori %10, %18 : vector<2x8x8xi1>
    %20 = vector.broadcast %4 : vector<2x1x1xi32> to vector<2x8x8xi32>
    %21 = arith.cmpi sge, %5, %20 : vector<2x8x8xi32>
    %22 = vector.broadcast %4 : vector<2x1x1xi32> to vector<2x8x8xi32>
    %23 = arith.cmpi sge, %6, %22 : vector<2x8x8xi32>
    %24 = arith.andi %21, %23 : vector<2x8x8xi1>
    %25 = arith.ori %19, %24 : vector<2x8x8xi1>
    %cst = arith.constant 0.000000e+00 : f32
    %cst_2 = arith.constant -1.000000e+30 : f32
    %26 = vector.broadcast %cst : f32 to vector<2x8x8xf32>
    %27 = vector.broadcast %cst_2 : f32 to vector<2x8x8xf32>
    %28 = arith.select %25, %26, %27 : vector<2x8x8xi1>, vector<2x8x8xf32>
    %c0_3 = arith.constant 0 : index
    %c0_4 = arith.constant 0 : index
    %c0_5 = arith.constant 0 : index
    %29 = vector.load %arg2[%c0_3, %c0_4, %c0_5] : memref<2x8x32xbf16, #tpu.memory_space<vmem>>, vector<2x8x32xbf16>
    %30 = arith.extf %29 : vector<2x8x32xbf16> to vector<2x8x32xf32>
    %31 = vector.shape_cast %30 : vector<2x8x32xf32> to vector<16x32xf32>
    %32 = arith.truncf %31 : vector<16x32xf32> to vector<16x32xbf16>
    %c0_6 = arith.constant 0 : index
    %c0_7 = arith.constant 0 : index
    %33 = vector.load %arg3[%c0_6, %c0_7] : memref<32x96xbf16, #tpu.memory_space<vmem>>, vector<32x96xbf16>
    %cst_8 = arith.constant dense<0.000000e+00> : vector<16x96xf32>
    %34 = tpu.matmul %32, %33, %cst_8 {dimension_numbers = #tpu.dot_dimension_numbers<[1], [0], [0], [1], [0, 0, 1, 1], [], []>} : vector<16x32xbf16>, vector<32x96xbf16>, vector<16x96xf32> -> vector<16x96xf32>
    %c0_9 = arith.constant 0 : index
    %c0_10 = arith.constant 0 : index
    %35 = vector.load %arg4[%c0_9, %c0_10] : memref<1x96xf32, #tpu.memory_space<vmem>>, vector<1x96xf32>
    %36 = vector.broadcast %35 : vector<1x96xf32> to vector<16x96xf32>
    %37 = arith.addf %34, %36 : vector<16x96xf32>
    %38 = vector.extract_strided_slice %37 {offsets = [0, 0], sizes = [16, 32], strides = [1, 1]} : vector<16x96xf32> to vector<16x32xf32>
    %39 = vector.shape_cast %38 : vector<16x32xf32> to vector<2x8x32xf32>
    %40 = arith.truncf %39 : vector<2x8x32xf32> to vector<2x8x32xbf16>
    %41 = vector.extract_strided_slice %37 {offsets = [0, 32], sizes = [16, 32], strides = [1, 1]} : vector<16x96xf32> to vector<16x32xf32>
    %42 = vector.shape_cast %41 : vector<16x32xf32> to vector<2x8x32xf32>
    %43 = arith.truncf %42 : vector<2x8x32xf32> to vector<2x8x32xbf16>
    %44 = vector.extract_strided_slice %37 {offsets = [0, 64], sizes = [16, 32], strides = [1, 1]} : vector<16x96xf32> to vector<16x32xf32>
    %45 = vector.shape_cast %44 : vector<16x32xf32> to vector<2x8x32xf32>
    %46 = arith.truncf %45 : vector<2x8x32xf32> to vector<2x8x32xbf16>
    %47 = vector.extract_strided_slice %40 {offsets = [0, 0, 0], sizes = [2, 8, 8], strides = [1, 1, 1]} : vector<2x8x32xbf16> to vector<2x8x8xbf16>
    %48 = vector.extract_strided_slice %43 {offsets = [0, 0, 0], sizes = [2, 8, 8], strides = [1, 1, 1]} : vector<2x8x32xbf16> to vector<2x8x8xbf16>
    %49 = vector.extract_strided_slice %46 {offsets = [0, 0, 0], sizes = [2, 8, 8], strides = [1, 1, 1]} : vector<2x8x32xbf16> to vector<2x8x8xbf16>
    "tpu.trace_start"() <{level = 10 : i32, message = "bqd,bkd->bqk"}> : () -> ()
    %cst_11 = arith.constant dense<0.000000e+00> : vector<2x8x8xf32>
    %50 = tpu.matmul %47, %48, %cst_11 {dimension_numbers = #tpu.dot_dimension_numbers<[2], [2], [1], [1], [0, 0, 0, 1, 1, 1], [0], [0]>} : vector<2x8x8xbf16>, vector<2x8x8xbf16>, vector<2x8x8xf32> -> vector<2x8x8xf32>
    "tpu.trace_stop"() : () -> ()
    %51 = arith.addf %50, %28 : vector<2x8x8xf32>
    %cst_12 = arith.constant dense<0xFF800000> : vector<2x8xf32>
    %52 = vector.multi_reduction <maximumf>, %51, %cst_12 [2] : vector<2x8x8xf32> to vector<2x8xf32>
    %53 = vector.shape_cast %52 : vector<2x8xf32> to vector<2x8x1xf32>
    %54 = vector.broadcast %53 : vector<2x8x1xf32> to vector<2x8x8xf32>
    %55 = arith.subf %51, %54 : vector<2x8x8xf32>
    %56 = math.exp %55 : vector<2x8x8xf32>
    %cst_13 = arith.constant dense<0.000000e+00> : vector<2x8xf32>
    %57 = vector.multi_reduction <add>, %56, %cst_13 [2] : vector<2x8x8xf32> to vector<2x8xf32>
    %58 = vector.shape_cast %57 : vector<2x8xf32> to vector<2x8x1xf32>
    %59 = tpu.reciprocal %58 {approx = true} : vector<2x8x1xf32> -> vector<2x8x1xf32>
    %60 = vector.broadcast %59 : vector<2x8x1xf32> to vector<2x8x8xf32>
    %61 = arith.mulf %56, %60 : vector<2x8x8xf32>
    %62 = arith.truncf %61 : vector<2x8x8xf32> to vector<2x8x8xbf16>
    "tpu.trace_start"() <{level = 10 : i32, message = "bqk,bkd->bqd"}> : () -> ()
    %cst_14 = arith.constant dense<0.000000e+00> : vector<2x8x8xf32>
    %63 = tpu.matmul %62, %49, %cst_14 {dimension_numbers = #tpu.dot_dimension_numbers<[2], [1], [1], [2], [0, 0, 0, 1, 1, 2], [0], [0]>} : vector<2x8x8xbf16>, vector<2x8x8xbf16>, vector<2x8x8xf32> -> vector<2x8x8xf32>
    "tpu.trace_stop"() : () -> ()
    %64 = vector.extract_strided_slice %40 {offsets = [0, 0, 8], sizes = [2, 8, 8], strides = [1, 1, 1]} : vector<2x8x32xbf16> to vector<2x8x8xbf16>
    %65 = vector.extract_strided_slice %43 {offsets = [0, 0, 8], sizes = [2, 8, 8], strides = [1, 1, 1]} : vector<2x8x32xbf16> to vector<2x8x8xbf16>
    %66 = vector.extract_strided_slice %46 {offsets = [0, 0, 8], sizes = [2, 8, 8], strides = [1, 1, 1]} : vector<2x8x32xbf16> to vector<2x8x8xbf16>
    "tpu.trace_start"() <{level = 10 : i32, message = "bqd,bkd->bqk"}> : () -> ()
    %cst_15 = arith.constant dense<0.000000e+00> : vector<2x8x8xf32>
    %67 = tpu.matmul %64, %65, %cst_15 {dimension_numbers = #tpu.dot_dimension_numbers<[2], [2], [1], [1], [0, 0, 0, 1, 1, 1], [0], [0]>} : vector<2x8x8xbf16>, vector<2x8x8xbf16>, vector<2x8x8xf32> -> vector<2x8x8xf32>
    "tpu.trace_stop"() : () -> ()
    %68 = arith.addf %67, %28 : vector<2x8x8xf32>
    %cst_16 = arith.constant dense<0xFF800000> : vector<2x8xf32>
    %69 = vector.multi_reduction <maximumf>, %68, %cst_16 [2] : vector<2x8x8xf32> to vector<2x8xf32>
    %70 = vector.shape_cast %69 : vector<2x8xf32> to vector<2x8x1xf32>
    %71 = vector.broadcast %70 : vector<2x8x1xf32> to vector<2x8x8xf32>
    %72 = arith.subf %68, %71 : vector<2x8x8xf32>
    %73 = math.exp %72 : vector<2x8x8xf32>
    %cst_17 = arith.constant dense<0.000000e+00> : vector<2x8xf32>
    %74 = vector.multi_reduction <add>, %73, %cst_17 [2] : vector<2x8x8xf32> to vector<2x8xf32>
    %75 = vector.shape_cast %74 : vector<2x8xf32> to vector<2x8x1xf32>
    %76 = tpu.reciprocal %75 {approx = true} : vector<2x8x1xf32> -> vector<2x8x1xf32>
    %77 = vector.broadcast %76 : vector<2x8x1xf32> to vector<2x8x8xf32>
    %78 = arith.mulf %73, %77 : vector<2x8x8xf32>
    %79 = arith.truncf %78 : vector<2x8x8xf32> to vector<2x8x8xbf16>
    "tpu.trace_start"() <{level = 10 : i32, message = "bqk,bkd->bqd"}> : () -> ()
    %cst_18 = arith.constant dense<0.000000e+00> : vector<2x8x8xf32>
    %80 = tpu.matmul %79, %66, %cst_18 {dimension_numbers = #tpu.dot_dimension_numbers<[2], [1], [1], [2], [0, 0, 0, 1, 1, 2], [0], [0]>} : vector<2x8x8xbf16>, vector<2x8x8xbf16>, vector<2x8x8xf32> -> vector<2x8x8xf32>
    "tpu.trace_stop"() : () -> ()
    %81 = vector.extract_strided_slice %40 {offsets = [0, 0, 16], sizes = [2, 8, 8], strides = [1, 1, 1]} : vector<2x8x32xbf16> to vector<2x8x8xbf16>
    %82 = vector.extract_strided_slice %43 {offsets = [0, 0, 16], sizes = [2, 8, 8], strides = [1, 1, 1]} : vector<2x8x32xbf16> to vector<2x8x8xbf16>
    %83 = vector.extract_strided_slice %46 {offsets = [0, 0, 16], sizes = [2, 8, 8], strides = [1, 1, 1]} : vector<2x8x32xbf16> to vector<2x8x8xbf16>
    "tpu.trace_start"() <{level = 10 : i32, message = "bqd,bkd->bqk"}> : () -> ()
    %cst_19 = arith.constant dense<0.000000e+00> : vector<2x8x8xf32>
    %84 = tpu.matmul %81, %82, %cst_19 {dimension_numbers = #tpu.dot_dimension_numbers<[2], [2], [1], [1], [0, 0, 0, 1, 1, 1], [0], [0]>} : vector<2x8x8xbf16>, vector<2x8x8xbf16>, vector<2x8x8xf32> -> vector<2x8x8xf32>
    "tpu.trace_stop"() : () -> ()
    %85 = arith.addf %84, %28 : vector<2x8x8xf32>
    %cst_20 = arith.constant dense<0xFF800000> : vector<2x8xf32>
    %86 = vector.multi_reduction <maximumf>, %85, %cst_20 [2] : vector<2x8x8xf32> to vector<2x8xf32>
    %87 = vector.shape_cast %86 : vector<2x8xf32> to vector<2x8x1xf32>
    %88 = vector.broadcast %87 : vector<2x8x1xf32> to vector<2x8x8xf32>
    %89 = arith.subf %85, %88 : vector<2x8x8xf32>
    %90 = math.exp %89 : vector<2x8x8xf32>
    %cst_21 = arith.constant dense<0.000000e+00> : vector<2x8xf32>
    %91 = vector.multi_reduction <add>, %90, %cst_21 [2] : vector<2x8x8xf32> to vector<2x8xf32>
    %92 = vector.shape_cast %91 : vector<2x8xf32> to vector<2x8x1xf32>
    %93 = tpu.reciprocal %92 {approx = true} : vector<2x8x1xf32> -> vector<2x8x1xf32>
    %94 = vector.broadcast %93 : vector<2x8x1xf32> to vector<2x8x8xf32>
    %95 = arith.mulf %90, %94 : vector<2x8x8xf32>
    %96 = arith.truncf %95 : vector<2x8x8xf32> to vector<2x8x8xbf16>
    "tpu.trace_start"() <{level = 10 : i32, message = "bqk,bkd->bqd"}> : () -> ()
    %cst_22 = arith.constant dense<0.000000e+00> : vector<2x8x8xf32>
    %97 = tpu.matmul %96, %83, %cst_22 {dimension_numbers = #tpu.dot_dimension_numbers<[2], [1], [1], [2], [0, 0, 0, 1, 1, 2], [0], [0]>} : vector<2x8x8xbf16>, vector<2x8x8xbf16>, vector<2x8x8xf32> -> vector<2x8x8xf32>
    "tpu.trace_stop"() : () -> ()
    %98 = vector.extract_strided_slice %40 {offsets = [0, 0, 24], sizes = [2, 8, 8], strides = [1, 1, 1]} : vector<2x8x32xbf16> to vector<2x8x8xbf16>
    %99 = vector.extract_strided_slice %43 {offsets = [0, 0, 24], sizes = [2, 8, 8], strides = [1, 1, 1]} : vector<2x8x32xbf16> to vector<2x8x8xbf16>
    %100 = vector.extract_strided_slice %46 {offsets = [0, 0, 24], sizes = [2, 8, 8], strides = [1, 1, 1]} : vector<2x8x32xbf16> to vector<2x8x8xbf16>
    "tpu.trace_start"() <{level = 10 : i32, message = "bqd,bkd->bqk"}> : () -> ()
    %cst_23 = arith.constant dense<0.000000e+00> : vector<2x8x8xf32>
    %101 = tpu.matmul %98, %99, %cst_23 {dimension_numbers = #tpu.dot_dimension_numbers<[2], [2], [1], [1], [0, 0, 0, 1, 1, 1], [0], [0]>} : vector<2x8x8xbf16>, vector<2x8x8xbf16>, vector<2x8x8xf32> -> vector<2x8x8xf32>
    "tpu.trace_stop"() : () -> ()
    %102 = arith.addf %101, %28 : vector<2x8x8xf32>
    %cst_24 = arith.constant dense<0xFF800000> : vector<2x8xf32>
    %103 = vector.multi_reduction <maximumf>, %102, %cst_24 [2] : vector<2x8x8xf32> to vector<2x8xf32>
    %104 = vector.shape_cast %103 : vector<2x8xf32> to vector<2x8x1xf32>
    %105 = vector.broadcast %104 : vector<2x8x1xf32> to vector<2x8x8xf32>
    %106 = arith.subf %102, %105 : vector<2x8x8xf32>
    %107 = math.exp %106 : vector<2x8x8xf32>
    %cst_25 = arith.constant dense<0.000000e+00> : vector<2x8xf32>
    %108 = vector.multi_reduction <add>, %107, %cst_25 [2] : vector<2x8x8xf32> to vector<2x8xf32>
    %109 = vector.shape_cast %108 : vector<2x8xf32> to vector<2x8x1xf32>
    %110 = tpu.reciprocal %109 {approx = true} : vector<2x8x1xf32> -> vector<2x8x1xf32>
    %111 = vector.broadcast %110 : vector<2x8x1xf32> to vector<2x8x8xf32>
    %112 = arith.mulf %107, %111 : vector<2x8x8xf32>
    %113 = arith.truncf %112 : vector<2x8x8xf32> to vector<2x8x8xbf16>
    "tpu.trace_start"() <{level = 10 : i32, message = "bqk,bkd->bqd"}> : () -> ()
    %cst_26 = arith.constant dense<0.000000e+00> : vector<2x8x8xf32>
    %114 = tpu.matmul %113, %100, %cst_26 {dimension_numbers = #tpu.dot_dimension_numbers<[2], [1], [1], [2], [0, 0, 0, 1, 1, 2], [0], [0]>} : vector<2x8x8xbf16>, vector<2x8x8xbf16>, vector<2x8x8xf32> -> vector<2x8x8xf32>
    "tpu.trace_stop"() : () -> ()
    %115 = tpu.concatenate %63, %80, %97, %114 in 2 : vector<2x8x8xf32>, vector<2x8x8xf32>, vector<2x8x8xf32>, vector<2x8x8xf32> -> vector<2x8x32xf32>
    %116 = vector.shape_cast %115 : vector<2x8x32xf32> to vector<16x32xf32>
    %117 = arith.truncf %116 : vector<16x32xf32> to vector<16x32xbf16>
    %c0_27 = arith.constant 0 : index
    %c0_28 = arith.constant 0 : index
    %118 = vector.load %arg5[%c0_27, %c0_28] : memref<32x32xbf16, #tpu.memory_space<vmem>>, vector<32x32xbf16>
    %cst_29 = arith.constant dense<0.000000e+00> : vector<16x32xf32>
    %119 = tpu.matmul %117, %118, %cst_29 {dimension_numbers = #tpu.dot_dimension_numbers<[1], [0], [0], [1], [0, 0, 1, 1], [], []>} : vector<16x32xbf16>, vector<32x32xbf16>, vector<16x32xf32> -> vector<16x32xf32>
    %c0_30 = arith.constant 0 : index
    %c0_31 = arith.constant 0 : index
    %120 = vector.load %arg6[%c0_30, %c0_31] : memref<1x32xf32, #tpu.memory_space<vmem>>, vector<1x32xf32>
    %121 = vector.broadcast %120 : vector<1x32xf32> to vector<16x32xf32>
    %122 = arith.addf %119, %121 : vector<16x32xf32>
    %123 = arith.addf %31, %122 : vector<16x32xf32>
    %c0_32 = arith.constant 0 : index
    %c0_33 = arith.constant 0 : index
    %124 = vector.load %arg7[%c0_32, %c0_33] : memref<1x32xf32, #tpu.memory_space<vmem>>, vector<1x32xf32>
    %c0_34 = arith.constant 0 : index
    %c0_35 = arith.constant 0 : index
    %125 = vector.load %arg8[%c0_34, %c0_35] : memref<1x32xf32, #tpu.memory_space<vmem>>, vector<1x32xf32>
    %cst_36 = arith.constant dense<0.000000e+00> : vector<16xf32>
    %126 = vector.multi_reduction <add>, %123, %cst_36 [1] : vector<16x32xf32> to vector<16xf32>
    %127 = vector.shape_cast %126 : vector<16xf32> to vector<16x1xf32>
    %cst_37 = arith.constant 3.200000e+01 : f32
    %128 = vector.broadcast %cst_37 : f32 to vector<16x1xf32>
    %129 = arith.divf %127, %128 : vector<16x1xf32>
    %130 = vector.broadcast %129 : vector<16x1xf32> to vector<16x32xf32>
    %131 = arith.subf %123, %130 : vector<16x32xf32>
    %132 = arith.mulf %131, %131 : vector<16x32xf32>
    %cst_38 = arith.constant dense<0.000000e+00> : vector<16xf32>
    %133 = vector.multi_reduction <add>, %132, %cst_38 [1] : vector<16x32xf32> to vector<16xf32>
    %134 = vector.shape_cast %133 : vector<16xf32> to vector<16x1xf32>
    %cst_39 = arith.constant 3.200000e+01 : f32
    %135 = vector.broadcast %cst_39 : f32 to vector<16x1xf32>
    %136 = arith.divf %134, %135 : vector<16x1xf32>
    %137 = vector.broadcast %129 : vector<16x1xf32> to vector<16x32xf32>
    %138 = arith.subf %123, %137 : vector<16x32xf32>
    %cst_40 = arith.constant 9.99999974E-6 : f32
    %139 = vector.broadcast %cst_40 : f32 to vector<16x1xf32>
    %140 = arith.addf %136, %139 : vector<16x1xf32>
    %141 = math.rsqrt %140 : vector<16x1xf32>
    %142 = vector.broadcast %141 : vector<16x1xf32> to vector<16x32xf32>
    %143 = arith.mulf %138, %142 : vector<16x32xf32>
    %144 = vector.broadcast %124 : vector<1x32xf32> to vector<16x32xf32>
    %145 = arith.mulf %143, %144 : vector<16x32xf32>
    %146 = vector.broadcast %125 : vector<1x32xf32> to vector<16x32xf32>
    %147 = arith.addf %145, %146 : vector<16x32xf32>
    %148 = arith.truncf %147 : vector<16x32xf32> to vector<16x32xbf16>
    %c0_41 = arith.constant 0 : index
    %c0_42 = arith.constant 0 : index
    %149 = vector.load %arg9[%c0_41, %c0_42] : memref<32x64xbf16, #tpu.memory_space<vmem>>, vector<32x64xbf16>
    %cst_43 = arith.constant dense<0.000000e+00> : vector<16x64xf32>
    %150 = tpu.matmul %148, %149, %cst_43 {dimension_numbers = #tpu.dot_dimension_numbers<[1], [0], [0], [1], [0, 0, 1, 1], [], []>} : vector<16x32xbf16>, vector<32x64xbf16>, vector<16x64xf32> -> vector<16x64xf32>
    %c0_44 = arith.constant 0 : index
    %c0_45 = arith.constant 0 : index
    %151 = vector.load %arg10[%c0_44, %c0_45] : memref<1x64xf32, #tpu.memory_space<vmem>>, vector<1x64xf32>
    %152 = vector.broadcast %151 : vector<1x64xf32> to vector<16x64xf32>
    %153 = arith.addf %150, %152 : vector<16x64xf32>
    %cst_46 = arith.constant 0.000000e+00 : f32
    %154 = vector.broadcast %cst_46 : f32 to vector<16x64xf32>
    %155 = arith.maximumf %153, %154 : vector<16x64xf32>
    %156 = arith.truncf %155 : vector<16x64xf32> to vector<16x64xbf16>
    %c0_47 = arith.constant 0 : index
    %c0_48 = arith.constant 0 : index
    %157 = vector.load %arg11[%c0_47, %c0_48] : memref<64x32xbf16, #tpu.memory_space<vmem>>, vector<64x32xbf16>
    %cst_49 = arith.constant dense<0.000000e+00> : vector<16x32xf32>
    %158 = tpu.matmul %156, %157, %cst_49 {dimension_numbers = #tpu.dot_dimension_numbers<[1], [0], [0], [1], [0, 0, 1, 1], [], []>} : vector<16x64xbf16>, vector<64x32xbf16>, vector<16x32xf32> -> vector<16x32xf32>
    %c0_50 = arith.constant 0 : index
    %c0_51 = arith.constant 0 : index
    %159 = vector.load %arg12[%c0_50, %c0_51] : memref<1x32xf32, #tpu.memory_space<vmem>>, vector<1x32xf32>
    %160 = vector.broadcast %159 : vector<1x32xf32> to vector<16x32xf32>
    %161 = arith.addf %158, %160 : vector<16x32xf32>
    %162 = arith.addf %147, %161 : vector<16x32xf32>
    %c0_52 = arith.constant 0 : index
    %c0_53 = arith.constant 0 : index
    %163 = vector.load %arg13[%c0_52, %c0_53] : memref<1x32xf32, #tpu.memory_space<vmem>>, vector<1x32xf32>
    %c0_54 = arith.constant 0 : index
    %c0_55 = arith.constant 0 : index
    %164 = vector.load %arg14[%c0_54, %c0_55] : memref<1x32xf32, #tpu.memory_space<vmem>>, vector<1x32xf32>
    %cst_56 = arith.constant dense<0.000000e+00> : vector<16xf32>
    %165 = vector.multi_reduction <add>, %162, %cst_56 [1] : vector<16x32xf32> to vector<16xf32>
    %166 = vector.shape_cast %165 : vector<16xf32> to vector<16x1xf32>
    %cst_57 = arith.constant 3.200000e+01 : f32
    %167 = vector.broadcast %cst_57 : f32 to vector<16x1xf32>
    %168 = arith.divf %166, %167 : vector<16x1xf32>
    %169 = vector.broadcast %168 : vector<16x1xf32> to vector<16x32xf32>
    %170 = arith.subf %162, %169 : vector<16x32xf32>
    %171 = arith.mulf %170, %170 : vector<16x32xf32>
    %cst_58 = arith.constant dense<0.000000e+00> : vector<16xf32>
    %172 = vector.multi_reduction <add>, %171, %cst_58 [1] : vector<16x32xf32> to vector<16xf32>
    %173 = vector.shape_cast %172 : vector<16xf32> to vector<16x1xf32>
    %cst_59 = arith.constant 3.200000e+01 : f32
    %174 = vector.broadcast %cst_59 : f32 to vector<16x1xf32>
    %175 = arith.divf %173, %174 : vector<16x1xf32>
    %176 = vector.broadcast %168 : vector<16x1xf32> to vector<16x32xf32>
    %177 = arith.subf %162, %176 : vector<16x32xf32>
    %cst_60 = arith.constant 9.99999974E-6 : f32
    %178 = vector.broadcast %cst_60 : f32 to vector<16x1xf32>
    %179 = arith.addf %175, %178 : vector<16x1xf32>
    %180 = math.rsqrt %179 : vector<16x1xf32>
    %181 = vector.broadcast %180 : vector<16x1xf32> to vector<16x32xf32>
    %182 = arith.mulf %177, %181 : vector<16x32xf32>
    %183 = vector.broadcast %163 : vector<1x32xf32> to vector<16x32xf32>
    %184 = arith.mulf %182, %183 : vector<16x32xf32>
    %185 = vector.broadcast %164 : vector<1x32xf32> to vector<16x32xf32>
    %186 = arith.addf %184, %185 : vector<16x32xf32>
    %187 = vector.shape_cast %186 : vector<16x32xf32> to vector<2x8x32xf32>
    %c0_61 = arith.constant 0 : index
    %c0_62 = arith.constant 0 : index
    %c0_63 = arith.constant 0 : index
    %188 = vector.load %arg15[%c0_61, %c0_62, %c0_63] : memref<2x8x32xf32, #tpu.memory_space<vmem>>, vector<2x8x32xf32>
    tpu.vector_store %arg15[%c0_61, %c0_62, %c0_63], %187 {strides = array<i32>} : memref<2x8x32xf32, #tpu.memory_space<vmem>>, vector<2x8x32xf32>,
    return
  }
  func.func @transform_0(%arg0: i32) -> (i32, i32, i32) {
    %c0_i32 = arith.constant 0 : i32
    %c0_i32_0 = arith.constant 0 : i32
    %c0_i32_1 = arith.constant 0 : i32
    return %arg0, %c0_i32, %c0_i32_0 : i32, i32, i32
  }
  func.func @transform_1(%arg0: i32) -> (i32, i32, i32) {
    %c0_i32 = arith.constant 0 : i32
    %c0_i32_0 = arith.constant 0 : i32
    %c0_i32_1 = arith.constant 0 : i32
    return %arg0, %c0_i32, %c0_i32_0 : i32, i32, i32
  }
  func.func @transform_2(%arg0: i32) -> (i32, i32) {
    %c0_i32 = arith.constant 0 : i32
    %c0_i32_0 = arith.constant 0 : i32
    %c0_i32_1 = arith.constant 0 : i32
    return %c0_i32, %c0_i32_0 : i32, i32
  }
  func.func @transform_3(%arg0: i32) -> (i32, i32) {
    %c0_i32 = arith.constant 0 : i32
    %c0_i32_0 = arith.constant 0 : i32
    %c0_i32_1 = arith.constant 0 : i32
    return %c0_i32, %c0_i32_0 : i32, i32
  }
  func.func @transform_4(%arg0: i32) -> (i32, i32) {
    %c0_i32 = arith.constant 0 : i32
    %c0_i32_0 = arith.constant 0 : i32
    %c0_i32_1 = arith.constant 0 : i32
    return %c0_i32, %c0_i32_0 : i32, i32
  }
  func.func @transform_5(%arg0: i32) -> (i32, i32) {
    %c0_i32 = arith.constant 0 : i32
    %c0_i32_0 = arith.constant 0 : i32
    %c0_i32_1 = arith.constant 0 : i32
    return %c0_i32, %c0_i32_0 : i32, i32
  }
  func.func @transform_6(%arg0: i32) -> (i32, i32) {
    %c0_i32 = arith.constant 0 : i32
    %c0_i32_0 = arith.constant 0 : i32
    %c0_i32_1 = arith.constant 0 : i32
    return %c0_i32, %c0_i32_0 : i32, i32
  }
  func.func @transform_7(%arg0: i32) -> (i32, i32) {
    %c0_i32 = arith.constant 0 : i32
    %c0_i32_0 = arith.constant 0 : i32
    %c0_i32_1 = arith.constant 0 : i32
    return %c0_i32, %c0_i32_0 : i32, i32
  }
  func.func @transform_8(%arg0: i32) -> (i32, i32) {
    %c0_i32 = arith.constant 0 : i32
    %c0_i32_0 = arith.constant 0 : i32
    %c0_i32_1 = arith.constant 0 : i32
    return %c0_i32, %c0_i32_0 : i32, i32
  }
  func.func @transform_9(%arg0: i32) -> (i32, i32) {
    %c0_i32 = arith.constant 0 : i32
    %c0_i32_0 = arith.constant 0 : i32
    %c0_i32_1 = arith.constant 0 : i32
    return %c0_i32, %c0_i32_0 : i32, i32
  }
  func.func @transform_10(%arg0: i32) -> (i32, i32) {
    %c0_i32 = arith.constant 0 : i32
    %c0_i32_0 = arith.constant 0 : i32
    %c0_i32_1 = arith.constant 0 : i32
    return %c0_i32, %c0_i32_0 : i32, i32
  }
  func.func @transform_11(%arg0: i32) -> (i32, i32) {
    %c0_i32 = arith.constant 0 : i32
    %c0_i32_0 = arith.constant 0 : i32
    %c0_i32_1 = arith.constant 0 : i32
    return %c0_i32, %c0_i32_0 : i32, i32
  }
  func.func @transform_12(%arg0: i32) -> (i32, i32) {
    %c0_i32 = arith.constant 0 : i32
    %c0_i32_0 = arith.constant 0 : i32
    %c0_i32_1 = arith.constant 0 : i32
    return %c0_i32, %c0_i32_0 : i32, i32
  }
  func.func @transform_13(%arg0: i32) -> (i32, i32) {
    %c0_i32 = arith.constant 0 : i32
    %c0_i32_0 = arith.constant 0 : i32
    %c0_i32_1 = arith.constant 0 : i32
    return %c0_i32, %c0_i32_0 : i32, i32
  }
  func.func @transform_14(%arg0: i32) -> (i32, i32, i32) {
    %c0_i32 = arith.constant 0 : i32
    %c0_i32_0 = arith.constant 0 : i32
    %c0_i32_1 = arith.constant 0 : i32
    return %arg0, %c0_i32, %c0_i32_0 : i32, i32, i32
  }
}

</mosaic_0001>

<llo_original>
// kernel: tpu_custom_call.1
$region0: #{tpu_custom_call.1}
  #allocation0 [shape = 'u32[]', space=smem, size = 0x4, offset = 0x4, fixed_abs, tag = 'smem constant byte address 0x4 - core index']
  #allocation1 [shape = 'u32[144,128]{1,0:T(1,128)}', space=vmem, size = 0x12000, scoped, tag = 'internal scratch']
  %s0 = inlined_call_operand.hbm [shape: s32[2,1,2], index: 0, kind: input, shape index: {}]
  %s1 = inlined_call_operand.hbm [shape: bf16[2,8,32], index: 1, kind: input, shape index: {}]
  %s2 = inlined_call_operand.vmem [shape: bf16[32,96], index: 2, kind: input, shape index: {}]
  %s3 = inlined_call_operand.vmem [shape: f32[1,96], index: 3, kind: input, shape index: {}]
  %s4 = inlined_call_operand.vmem [shape: bf16[32,32], index: 4, kind: input, shape index: {}]
  %s5 = inlined_call_operand.vmem [shape: f32[1,32], index: 5, kind: input, shape index: {}]
  %s6 = inlined_call_operand.vmem [shape: f32[1,32], index: 6, kind: input, shape index: {}]
  %s7 = inlined_call_operand.vmem [shape: f32[1,32], index: 7, kind: input, shape index: {}]
  %s8 = inlined_call_operand.vmem [shape: bf16[32,64], index: 8, kind: input, shape index: {}]
  %s9 = inlined_call_operand.vmem [shape: f32[1,64], index: 9, kind: input, shape index: {}]
  %s10 = inlined_call_operand.vmem [shape: bf16[64,32], index: 10, kind: input, shape index: {}]
  %s11 = inlined_call_operand.vmem [shape: f32[1,32], index: 11, kind: input, shape index: {}]
  %s12 = inlined_call_operand.vmem [shape: f32[1,32], index: 12, kind: input, shape index: {}]
  %s13 = inlined_call_operand.vmem [shape: f32[1,32], index: 13, kind: input, shape index: {}]
  %s14 = inlined_call_operand.hbm [shape: f32[2,8,32], index: 14, kind: output, shape index: {}]
  %s15 = sld [smem:[#allocation0]]
  $region74: #{tpu_custom_call.1} parent=0
    _
  %s17 = ssub.s32 1, %s15
  %s18 = scalar_select 0, %s17, %s15
  $region1: #{tpu_custom_call.1} parent=0
    #allocation2 [shape = 'u8[1024]{0}', space=vmem, size = 0x400, scoped, tag = 'input window, operand 0, single buffered']
    #allocation3 [shape = 's32[1]{0}', space=sflag, size = 0x4, scoped, tag = 'scoped memory for tpu_custom_call.1']
    #allocation4 [shape = 's32[1]{0}', space=sflag, size = 0x4, scoped, tag = 'scoped memory for tpu_custom_call.1']
    #allocation5 [shape = 'u8[4096]{0}', space=vmem, size = 0x1000, scoped, tag = 'input window, operand 1, single buffered']
    #allocation6 [shape = 's32[1]{0}', space=sflag, size = 0x4, scoped, tag = 'scoped memory for tpu_custom_call.1']
    #allocation7 [shape = 'u8[8192]{0}', space=vmem, size = 0x2000, scoped, tag = 'output window, operand 0, single buffered']
    %19 = vsyncpa [#allocation3], 0
    %20 = vsyncpa [#allocation6], 0
    %21 = vsyncpa [#allocation4], 0
    // Predicated region
    $region2: #{tpu_custom_call.1} parent=1 // pred_check
      _
    $region3: #{tpu_custom_call.1} parent=1 // pred_check_branch
      %23 = sbr.rel (0) target = $region5
    $region4: #{tpu_custom_call.1} parent=1 // pred_region
      %s25 = ssub.s32 32, 32
      %26 = vsyncadd [#allocation3], %s25
      %s27 = sshll.u32 [#allocation2], 4
      %s28 = int_to_ptr.vmem [resolvable:$true] %s27
      %33 = dma.hbm_to_vmem [thread:$0]  %s0, 32, %s28, [#allocation3], 16, 16, 1
    $region5: #{tpu_custom_call.1} parent=1 // pred_fallthru
      _
    // Predicated region
    $region6: #{tpu_custom_call.1} parent=1 // pred_check
      _
    $region7: #{tpu_custom_call.1} parent=1 // pred_check_branch
      %35 = sbr.rel (0) target = $region9
    $region8: #{tpu_custom_call.1} parent=1 // pred_region
      %s37 = ssub.s32 128, 128
      %38 = vsyncadd [#allocation6], %s37
      %s39 = sshll.u32 [#allocation5], 4
      %s40 = int_to_ptr.vmem [resolvable:$true] %s39
      %45 = dma.hbm_to_vmem [thread:$0]  %s1, 128, %s40, [#allocation6], 64, 64, 4
    $region9: #{tpu_custom_call.1} parent=1 // pred_fallthru
      _
    // Predicated region
    $region10: #{tpu_custom_call.1} parent=1 // pred_check
      _
    $region11: #{tpu_custom_call.1} parent=1 // pred_check_branch
      %47 = sbr.rel (0) target = $region13
    $region12: #{tpu_custom_call.1} parent=1 // pred_region
      _
    $region13: #{tpu_custom_call.1} parent=1 // pred_fallthru
      _
    // Predicated region
    $region14: #{tpu_custom_call.1} parent=1 // pred_check
      _
    $region15: #{tpu_custom_call.1} parent=1 // pred_check_branch
      %49 = sbr.rel (0) target = $region17
    $region16: #{tpu_custom_call.1} parent=1 // pred_region
      _
    $region17: #{tpu_custom_call.1} parent=1 // pred_fallthru
      _
    // Predicated region
    $region18: #{tpu_custom_call.1} parent=1 // pred_check
      _
    $region19: #{tpu_custom_call.1} parent=1 // pred_check_branch
      %51 = sbr.rel (0) target = $region21
    $region20: #{tpu_custom_call.1} parent=1 // pred_region
      _
    $region21: #{tpu_custom_call.1} parent=1 // pred_fallthru
      _
    // Predicated region
    $region22: #{tpu_custom_call.1} parent=1 // pred_check
      _
    $region23: #{tpu_custom_call.1} parent=1 // pred_check_branch
      %53 = sbr.rel (0) target = $region25
    $region24: #{tpu_custom_call.1} parent=1 // pred_region
      _
    $region25: #{tpu_custom_call.1} parent=1 // pred_fallthru
      _
    // Predicated region
    $region26: #{tpu_custom_call.1} parent=1 // pred_check
      _
    $region27: #{tpu_custom_call.1} parent=1 // pred_check_branch
      %55 = sbr.rel (0) target = $region29
    $region28: #{tpu_custom_call.1} parent=1 // pred_region
      _
    $region29: #{tpu_custom_call.1} parent=1 // pred_fallthru
      _
    // Predicated region
    $region30: #{tpu_custom_call.1} parent=1 // pred_check
      _
    $region31: #{tpu_custom_call.1} parent=1 // pred_check_branch
      %57 = sbr.rel (0) target = $region33
    $region32: #{tpu_custom_call.1} parent=1 // pred_region
      _
    $region33: #{tpu_custom_call.1} parent=1 // pred_fallthru
      _
    // Predicated region
    $region34: #{tpu_custom_call.1} parent=1 // pred_check
      _
    $region35: #{tpu_custom_call.1} parent=1 // pred_check_branch
      %59 = sbr.rel (0) target = $region37
    $region36: #{tpu_custom_call.1} parent=1 // pred_region
      _
    $region37: #{tpu_custom_call.1} parent=1 // pred_fallthru
      _
    // Predicated region
    $region38: #{tpu_custom_call.1} parent=1 // pred_check
      _
    $region39: #{tpu_custom_call.1} parent=1 // pred_check_branch
      %61 = sbr.rel (0) target = $region41
    $region40: #{tpu_custom_call.1} parent=1 // pred_region
      _
    $region41: #{tpu_custom_call.1} parent=1 // pred_fallthru
      _
    // Predicated region
    $region42: #{tpu_custom_call.1} parent=1 // pred_check
      _
    $region43: #{tpu_custom_call.1} parent=1 // pred_check_branch
      %63 = sbr.rel (0) target = $region45
    $region44: #{tpu_custom_call.1} parent=1 // pred_region
      _
    $region45: #{tpu_custom_call.1} parent=1 // pred_fallthru
      _
    // Predicated region
    $region46: #{tpu_custom_call.1} parent=1 // pred_check
      _
    $region47: #{tpu_custom_call.1} parent=1 // pred_check_branch
      %65 = sbr.rel (0) target = $region49
    $region48: #{tpu_custom_call.1} parent=1 // pred_region
      _
    $region49: #{tpu_custom_call.1} parent=1 // pred_fallthru
      _
    // Predicated region
    $region50: #{tpu_custom_call.1} parent=1 // pred_check
      _
    $region51: #{tpu_custom_call.1} parent=1 // pred_check_branch
      %67 = sbr.rel (0) target = $region53
    $region52: #{tpu_custom_call.1} parent=1 // pred_region
      _
    $region53: #{tpu_custom_call.1} parent=1 // pred_fallthru
      _
    // Predicated region
    $region54: #{tpu_custom_call.1} parent=1 // pred_check
      _
    $region55: #{tpu_custom_call.1} parent=1 // pred_check_branch
      %69 = sbr.rel (0) target = $region57
    $region56: #{tpu_custom_call.1} parent=1 // pred_region
      _
    $region57: #{tpu_custom_call.1} parent=1 // pred_fallthru
      _
    // Predicated region
    $region58: #{tpu_custom_call.1} parent=1 // pred_check
      _
    $region59: #{tpu_custom_call.1} parent=1 // pred_check_branch
      %71 = sbr.rel (0) target = $region61
    $region60: #{tpu_custom_call.1} parent=1 // pred_region
      %72 = dma.done [#allocation3], 32
    $region61: #{tpu_custom_call.1} parent=1 // pred_fallthru
      _
    // Predicated region
    $region62: #{tpu_custom_call.1} parent=1 // pred_check
      _
    $region63: #{tpu_custom_call.1} parent=1 // pred_check_branch
      %74 = sbr.rel (0) target = $region65
    $region64: #{tpu_custom_call.1} parent=1 // pred_region
      %75 = dma.done [#allocation6], 128
    $region65: #{tpu_custom_call.1} parent=1 // pred_fallthru
      _
    %v77 = vld [vmem:[#allocation2] sm:$0x1]
    %v78 = vld [vmem:[#allocation2 + $0x1] sm:$0x1]
    %v79 = vsub.s32 8, %v77
    %v80 = vsub.s32 8, %v78
    %v81 = vlaneseq
    %v82 = vshrl.u32 %v81, 7
    %v83 = vlaneseq
    %v84 = vand.u32 %v83, 127
    %vm85 = vcmp.eq.s32.totalorder %v82, %v84
    %v86 = vlaneseq
    %v87 = vshrl.u32 %v86, 7
    %v88 = vsub.s32 0, %v87
    %v89 = vrot.slane %v77, %v88
    %v90 = vlaneseq
    %v91 = vshrl.u32 %v90, 7
    %v92 = vsub.s32 0, %v91
    %v93 = vrot.slane %v78, %v92
    %94 = vset.pattern.permute.xlu0 0
    %95 = vperm.xlu0 %94, %v89
    %v96 = vpop.permute.xlu0 %95
    %97 = vset.pattern.permute.xlu0 0
    %98 = vperm.xlu0 %97, %v93
    %v99 = vpop.permute.xlu0 %98
    %vm100 = vcmp.lt.s32.totalorder %v82, %v96
    %vm101 = vcmp.lt.s32.totalorder %v82, %v99
    %vm102 = vmand %vm85, %vm100
    %vm103 = vmand %vm85, %vm101
    %vm104 = vcmp.ge.s32.totalorder %v82, %v96
    %vm105 = vcmp.ge.s32.totalorder %v82, %v99
    %vm106 = vcmp.ge.s32.totalorder %v84, %v96
    %vm107 = vcmp.ge.s32.totalorder %v84, %v99
    %vm108 = vmand %vm104, %vm106
    %vm109 = vmand %vm105, %vm107
    %v110 = vlaneseq
    %v111 = vshrl.u32 %v110, 7
    %v112 = vsub.s32 0, %v111
    %v113 = vrot.slane %v79, %v112
    %v114 = vlaneseq
    %v115 = vshrl.u32 %v114, 7
    %v116 = vsub.s32 0, %v115
    %v117 = vrot.slane %v80, %v116
    %118 = vset.pattern.permute.xlu0 1
    %119 = vperm.xlu0 %118, %v113
    %v120 = vpop.permute.xlu0 %119
    %121 = vset.pattern.permute.xlu0 1
    %122 = vperm.xlu0 %121, %v117
    %v123 = vpop.permute.xlu0 %122
    %vm124 = vcmp.lt.s32.totalorder %v84, %v120
    %vm125 = vcmp.lt.s32.totalorder %v84, %v123
    %vm126 = vmand %vm108, %vm124
    %vm127 = vmand %vm109, %vm125
    %vm128 = vmor %vm102, %vm126
    %vm129 = vmor %vm103, %vm127
    %vm130 = vcmp.ge.s32.totalorder %v82, %v120
    %vm131 = vcmp.ge.s32.totalorder %v82, %v123
    %vm132 = vcmp.ge.s32.totalorder %v84, %v120
    %vm133 = vcmp.ge.s32.totalorder %v84, %v123
    %vm134 = vmand %vm130, %vm132
    %vm135 = vmand %vm131, %vm133
    %vm136 = vmor %vm128, %vm134
    %vm137 = vmor %vm129, %vm135
    %v138 = vsel %vm136, 0.0, -1e+30
    %v139 = vsel %vm137, 0.0, -1e+30
    %v140 = vld [vmem:[#allocation5] sm:$0xf]
    %v141 = vld [vmem:[#allocation5 + $0x4] sm:$0xf]
    %v142 = vunpack.c.l.bf16 %v140
    %v143 = vunpack.c.l.bf16 %v141
    %v144 = vpack.c.bf16 %v143, %v142
    %v145 = vld [vmem:[%s2] sm:$0xf]
    %v146 = vld [vmem:[%s2 + $0x4] sm:$0xf]
    %v147 = vld [vmem:[%s2 + $0x8] sm:$0xf]
    %v148 = vld [vmem:[%s2 + $0xc] sm:$0xf]
    %v149 = vld [vmem:[%s3] sm:$0x1]
    %v151 = vlaneseq
    %v152 = vshrl.u32 %v151, 7
    %v153 = vsub.s32 0, %v152
    %v154 = vrot.slane %v149, %v153
    %v160 = vunpack.c.l.b16 %v145
    %v161 = vunpack.c.l.b16 %v146
    %v162 = vunpack.c.l.b16 %v147
    %v163 = vunpack.c.l.b16 %v148
    %v164 = vpack.c.b16 %v161, %v160
    %v165 = vpack.c.b16 %v163, %v162
    %vm168 = vcmask 261120
    %v170 = vsel %vm168, %v144, 0
    %172 = vmatprep.subr.bf16.mxu0 0
    %173 = vmatpush1.bf16.msra.mxu0 %v164
    %174 = vmatprep.subr.bf16.mxu0 0
    %175 = vmatpush1.bf16.msra.mxu0 %v165
    %176 = vmatprep.subr.bf16.mxu0 0
    %177 = vmatpush1.bf16.msra.mxu0 0
    %178 = vmatprep.subr.bf16.mxu0 0
    %179 = vmatpush1.bf16.msra.mxu0 0
    %180 = vmatprep.subr.bf16.mxu0 0
    %181 = vmatpush1.bf16.msra.mxu0 0
    %182 = vmatprep.subr.bf16.mxu0 0
    %183 = vmatpush1.bf16.msra.mxu0 0
    %184 = vmatprep.subr.bf16.mxu0 0
    %185 = vmatpush1.bf16.msra.mxu0 0
    %186 = vmatprep.subr.bf16.mxu0 0
    %187 = vmatpush1.bf16.msra.mxu0 0
    %188 = vmatprep.subr.bf16.mxu0 0
    %189 = vmatpush1.bf16.msra.mxu0 0
    %190 = vmatprep.subr.bf16.mxu0 0
    %191 = vmatpush1.bf16.msra.mxu0 0
    %192 = vmatprep.subr.bf16.mxu0 0
    %193 = vmatpush1.bf16.msra.mxu0 0
    %194 = vmatprep.subr.bf16.mxu0 0
    %195 = vmatpush1.bf16.msra.mxu0 0
    %196 = vmatprep.subr.bf16.mxu0 0
    %197 = vmatpush1.bf16.msra.mxu0 0
    %198 = vmatprep.subr.bf16.mxu0 0
    %199 = vmatpush1.bf16.msra.mxu0 0
    %200 = vmatprep.subr.bf16.mxu0 0
    %201 = vmatpush1.bf16.msra.mxu0 0
    %202 = vmatprep.subr.bf16.mxu0 0
    %203 = vmatpush1.bf16.msra.mxu0 0
    %204 = vmatprep.mubr.bf16.mxu0 0
    %205 = vmatmul.mubr.bf16.gmra.mrb[0].mxu0 %v170
    %v206 = vpop.f32.mrb[0].mxu0
    %v207 = vadd.f32 %v154, %v206
    %v208 = vpop.f32.mrb[0].mxu0
    %v209 = vpop.f32.mrb[0].mxu0
    %v210 = vadd.f32 %v154, %v209
    %v211 = vpop.f32.mrb[0].mxu0
    %212 = vdwg.mxu0
    %v213 = vpack.c.bf16 %v207, %v207
    %v214 = vpack.c.bf16 %v210, %v210
    %216 = vrot.lane.b32.xlu0 %v213, 96
    %v217 = vpop.permute.xlu0 %216
    %vm218 = vcmask 64512
    %v220 = vsel %vm218, %v213, 0
    %v223 = vsel %vm218, %v217, 0
    %225 = vmatprep.subr.bf16.mxu0 0
    %226 = vmatpush1.bf16.xpose.msra.mxu0 %v223
    %227 = vmatprep.subr.bf16.mxu0 0
    %228 = vmatpush1.bf16.xpose.msra.mxu0 0
    %229 = vmatprep.subr.bf16.mxu0 0
    %230 = vmatpush1.bf16.xpose.msra.mxu0 0
    %231 = vmatprep.subr.bf16.mxu0 0
    %232 = vmatpush1.bf16.xpose.msra.mxu0 0
    %233 = vmatprep.subr.bf16.mxu0 0
    %234 = vmatpush1.bf16.xpose.msra.mxu0 0
    %235 = vmatprep.subr.bf16.mxu0 0
    %236 = vmatpush1.bf16.xpose.msra.mxu0 0
    %237 = vmatprep.subr.bf16.mxu0 0
    %238 = vmatpush1.bf16.xpose.msra.mxu0 0
    %239 = vmatprep.subr.bf16.mxu0 0
    %240 = vmatpush1.bf16.xpose.msra.mxu0 0
    %241 = vmatprep.subr.bf16.mxu0 0
    %242 = vmatpush1.bf16.xpose.msra.mxu0 0
    %243 = vmatprep.subr.bf16.mxu0 0
    %244 = vmatpush1.bf16.xpose.msra.mxu0 0
    %245 = vmatprep.subr.bf16.mxu0 0
    %246 = vmatpush1.bf16.xpose.msra.mxu0 0
    %247 = vmatprep.subr.bf16.mxu0 0
    %248 = vmatpush1.bf16.xpose.msra.mxu0 0
    %249 = vmatprep.subr.bf16.mxu0 0
    %250 = vmatpush1.bf16.xpose.msra.mxu0 0
    %251 = vmatprep.subr.bf16.mxu0 0
    %252 = vmatpush1.bf16.xpose.msra.mxu0 0
    %253 = vmatprep.subr.bf16.mxu0 0
    %254 = vmatpush1.bf16.xpose.msra.mxu0 0
    %255 = vmatprep.subr.bf16.mxu0 0
    %256 = vmatpush1.bf16.xpose.msra.mxu0 0
    %257 = vmatprep.mubr.bf16.mxu0 0
    %258 = vmatmul.mubr.bf16.gmra.mrb[0].mxu0 %v220
    %v259 = vpop.f32.mrb[0].mxu0
    %v260 = vadd.f32 %v138, %v259
    %v261 = vpop.f32.mrb[0].mxu0
    %v262 = vpop.f32.mrb[0].mxu0
    %v263 = vpop.f32.mrb[0].mxu0
    %264 = vdwg.mxu0
    %266 = vrot.lane.b32.xlu0 %v214, 96
    %v267 = vpop.permute.xlu0 %266
    %v269 = vsel %vm218, %v214, 0
    %v272 = vsel %vm218, %v267, 0
    %274 = vmatprep.subr.bf16.mxu0 0
    %275 = vmatpush1.bf16.xpose.msra.mxu0 %v272
    %276 = vmatprep.subr.bf16.mxu0 0
    %277 = vmatpush1.bf16.xpose.msra.mxu0 0
    %278 = vmatprep.subr.bf16.mxu0 0
    %279 = vmatpush1.bf16.xpose.msra.mxu0 0
    %280 = vmatprep.subr.bf16.mxu0 0
    %281 = vmatpush1.bf16.xpose.msra.mxu0 0
    %282 = vmatprep.subr.bf16.mxu0 0
    %283 = vmatpush1.bf16.xpose.msra.mxu0 0
    %284 = vmatprep.subr.bf16.mxu0 0
    %285 = vmatpush1.bf16.xpose.msra.mxu0 0
    %286 = vmatprep.subr.bf16.mxu0 0
    %287 = vmatpush1.bf16.xpose.msra.mxu0 0
    %288 = vmatprep.subr.bf16.mxu0 0
    %289 = vmatpush1.bf16.xpose.msra.mxu0 0
    %290 = vmatprep.subr.bf16.mxu0 0
    %291 = vmatpush1.bf16.xpose.msra.mxu0 0
    %292 = vmatprep.subr.bf16.mxu0 0
    %293 = vmatpush1.bf16.xpose.msra.mxu0 0
    %294 = vmatprep.subr.bf16.mxu0 0
    %295 = vmatpush1.bf16.xpose.msra.mxu0 0
    %296 = vmatprep.subr.bf16.mxu0 0
    %297 = vmatpush1.bf16.xpose.msra.mxu0 0
    %298 = vmatprep.subr.bf16.mxu0 0
    %299 = vmatpush1.bf16.xpose.msra.mxu0 0
    %300 = vmatprep.subr.bf16.mxu0 0
    %301 = vmatpush1.bf16.xpose.msra.mxu0 0
    %302 = vmatprep.subr.bf16.mxu0 0
    %303 = vmatpush1.bf16.xpose.msra.mxu0 0
    %304 = vmatprep.subr.bf16.mxu0 0
    %305 = vmatpush1.bf16.xpose.msra.mxu0 0
    %306 = vmatprep.mubr.bf16.mxu0 0
    %307 = vmatmul.mubr.bf16.gmra.mrb[0].mxu0 %v269
    %v308 = vpop.f32.mrb[0].mxu0
    %v309 = vadd.f32 %v139, %v308
    %v310 = vpop.f32.mrb[0].mxu0
    %v311 = vpop.f32.mrb[0].mxu0
    %v312 = vpop.f32.mrb[0].mxu0
    %313 = vdwg.mxu0
    %v314 = vsel %vm218, %v260, -inf
    %315 = vmax.xlane.f32.xlu0 %v314
    %v316 = vpop.xlane.xlu0 %315
    %v317 = vsel %vm218, %v309, -inf
    %318 = vmax.xlane.f32.xlu0 %v317
    %v319 = vpop.xlane.xlu0 %318
    %v320 = vsub.f32 %v260, %v316
    %v321 = vsub.f32 %v309, %v319
    %v322 = vmul.f32 %v320, 1.442695
    %v323 = vpow.pop %v322
    %v324 = vmul.f32 %v321, 1.442695
    %v325 = vpow.pop %v324
    %v326 = vsel %vm218, %v323, 0.0
    %327 = vadd.xlane.f32.xlu0 %v326
    %v328 = vpop.xlane.xlu0 %327
    %v329 = vsel %vm218, %v325, 0.0
    %330 = vadd.xlane.f32.xlu0 %v329
    %v331 = vpop.xlane.xlu0 %330
    %v332 = vrcp.pop %v328
    %v333 = vrcp.pop %v331
    %v334 = vmul.f32 %v323, %v332
    %v335 = vmul.f32 %v325, %v333
    %v336 = vpack.c.bf16 %v334, %v334
    %v337 = vpack.c.bf16 %v335, %v335
    %338 = vrot.lane.b32.xlu0 %v213, 64
    %v339 = vpop.permute.xlu0 %338
    %v341 = vsel %vm218, %v336, 0
    %vm343 = vcmask 1043456
    %v345 = vsel %vm343, %v339, 0
    %347 = vmatprep.subr.bf16.mxu0 0
    %348 = vmatpush1.bf16.msra.mxu0 %v345
    %349 = vmatprep.subr.bf16.mxu0 0
    %350 = vmatpush1.bf16.msra.mxu0 0
    %351 = vmatprep.subr.bf16.mxu0 0
    %352 = vmatpush1.bf16.msra.mxu0 0
    %353 = vmatprep.subr.bf16.mxu0 0
    %354 = vmatpush1.bf16.msra.mxu0 0
    %355 = vmatprep.subr.bf16.mxu0 0
    %356 = vmatpush1.bf16.msra.mxu0 0
    %357 = vmatprep.subr.bf16.mxu0 0
    %358 = vmatpush1.bf16.msra.mxu0 0
    %359 = vmatprep.subr.bf16.mxu0 0
    %360 = vmatpush1.bf16.msra.mxu0 0
    %361 = vmatprep.subr.bf16.mxu0 0
    %362 = vmatpush1.bf16.msra.mxu0 0
    %363 = vmatprep.subr.bf16.mxu0 0
    %364 = vmatpush1.bf16.msra.mxu0 0
    %365 = vmatprep.subr.bf16.mxu0 0
    %366 = vmatpush1.bf16.msra.mxu0 0
    %367 = vmatprep.subr.bf16.mxu0 0
    %368 = vmatpush1.bf16.msra.mxu0 0
    %369 = vmatprep.subr.bf16.mxu0 0
    %370 = vmatpush1.bf16.msra.mxu0 0
    %371 = vmatprep.subr.bf16.mxu0 0
    %372 = vmatpush1.bf16.msra.mxu0 0
    %373 = vmatprep.subr.bf16.mxu0 0
    %374 = vmatpush1.bf16.msra.mxu0 0
    %375 = vmatprep.subr.bf16.mxu0 0
    %376 = vmatpush1.bf16.msra.mxu0 0
    %377 = vmatprep.subr.bf16.mxu0 0
    %378 = vmatpush1.bf16.msra.mxu0 0
    %379 = vmatprep.mubr.bf16.mxu0 0
    %380 = vmatmul.mubr.bf16.gmra.mrb[0].mxu0 %v341
    %v381 = vpop.f32.mrb[0].mxu0
    %v382 = vadd.f32 0.0, %v381
    %v383 = vpop.f32.mrb[0].mxu0
    %v384 = vpop.f32.mrb[0].mxu0
    %v385 = vpop.f32.mrb[0].mxu0
    %386 = vdwg.mxu0
    %387 = vrot.lane.b32.xlu0 %v214, 64
    %v388 = vpop.permute.xlu0 %387
    %v390 = vsel %vm218, %v337, 0
    %v393 = vsel %vm343, %v388, 0
    %395 = vmatprep.subr.bf16.mxu0 0
    %396 = vmatpush1.bf16.msra.mxu0 %v393
    %397 = vmatprep.subr.bf16.mxu0 0
    %398 = vmatpush1.bf16.msra.mxu0 0
    %399 = vmatprep.subr.bf16.mxu0 0
    %400 = vmatpush1.bf16.msra.mxu0 0
    %401 = vmatprep.subr.bf16.mxu0 0
    %402 = vmatpush1.bf16.msra.mxu0 0
    %403 = vmatprep.subr.bf16.mxu0 0
    %404 = vmatpush1.bf16.msra.mxu0 0
    %405 = vmatprep.subr.bf16.mxu0 0
    %406 = vmatpush1.bf16.msra.mxu0 0
    %407 = vmatprep.subr.bf16.mxu0 0
    %408 = vmatpush1.bf16.msra.mxu0 0
    %409 = vmatprep.subr.bf16.mxu0 0
    %410 = vmatpush1.bf16.msra.mxu0 0
    %411 = vmatprep.subr.bf16.mxu0 0
    %412 = vmatpush1.bf16.msra.mxu0 0
    %413 = vmatprep.subr.bf16.mxu0 0
    %414 = vmatpush1.bf16.msra.mxu0 0
    %415 = vmatprep.subr.bf16.mxu0 0
    %416 = vmatpush1.bf16.msra.mxu0 0
    %417 = vmatprep.subr.bf16.mxu0 0
    %418 = vmatpush1.bf16.msra.mxu0 0
    %419 = vmatprep.subr.bf16.mxu0 0
    %420 = vmatpush1.bf16.msra.mxu0 0
    %421 = vmatprep.subr.bf16.mxu0 0
    %422 = vmatpush1.bf16.msra.mxu0 0
    %423 = vmatprep.subr.bf16.mxu0 0
    %424 = vmatpush1.bf16.msra.mxu0 0
    %425 = vmatprep.subr.bf16.mxu0 0
    %426 = vmatpush1.bf16.msra.mxu0 0
    %427 = vmatprep.mubr.bf16.mxu0 0
    %428 = vmatmul.mubr.bf16.gmra.mrb[0].mxu0 %v390
    %v429 = vpop.f32.mrb[0].mxu0
    %v430 = vadd.f32 0.0, %v429
    %v431 = vpop.f32.mrb[0].mxu0
    %v432 = vpop.f32.mrb[0].mxu0
    %v433 = vpop.f32.mrb[0].mxu0
    %434 = vdwg.mxu0
    %435 = vrot.lane.b32.xlu0 %v213, 120
    %v436 = vpop.permute.xlu0 %435
    %437 = vrot.lane.b32.xlu0 %v213, 88
    %v438 = vpop.permute.xlu0 %437
    %v440 = vsel %vm218, %v436, 0
    %v443 = vsel %vm218, %v438, 0
    %445 = vmatprep.subr.bf16.mxu0 0
    %446 = vmatpush1.bf16.xpose.msra.mxu0 %v443
    %447 = vmatprep.subr.bf16.mxu0 0
    %448 = vmatpush1.bf16.xpose.msra.mxu0 0
    %449 = vmatprep.subr.bf16.mxu0 0
    %450 = vmatpush1.bf16.xpose.msra.mxu0 0
    %451 = vmatprep.subr.bf16.mxu0 0
    %452 = vmatpush1.bf16.xpose.msra.mxu0 0
    %453 = vmatprep.subr.bf16.mxu0 0
    %454 = vmatpush1.bf16.xpose.msra.mxu0 0
    %455 = vmatprep.subr.bf16.mxu0 0
    %456 = vmatpush1.bf16.xpose.msra.mxu0 0
    %457 = vmatprep.subr.bf16.mxu0 0
    %458 = vmatpush1.bf16.xpose.msra.mxu0 0
    %459 = vmatprep.subr.bf16.mxu0 0
    %460 = vmatpush1.bf16.xpose.msra.mxu0 0
    %461 = vmatprep.subr.bf16.mxu0 0
    %462 = vmatpush1.bf16.xpose.msra.mxu0 0
    %463 = vmatprep.subr.bf16.mxu0 0
    %464 = vmatpush1.bf16.xpose.msra.mxu0 0
    %465 = vmatprep.subr.bf16.mxu0 0
    %466 = vmatpush1.bf16.xpose.msra.mxu0 0
    %467 = vmatprep.subr.bf16.mxu0 0
    %468 = vmatpush1.bf16.xpose.msra.mxu0 0
    %469 = vmatprep.subr.bf16.mxu0 0
    %470 = vmatpush1.bf16.xpose.msra.mxu0 0
    %471 = vmatprep.subr.bf16.mxu0 0
    %472 = vmatpush1.bf16.xpose.msra.mxu0 0
    %473 = vmatprep.subr.bf16.mxu0 0
    %474 = vmatpush1.bf16.xpose.msra.mxu0 0
    %475 = vmatprep.subr.bf16.mxu0 0
    %476 = vmatpush1.bf16.xpose.msra.mxu0 0
    %477 = vmatprep.mubr.bf16.mxu0 0
    %478 = vmatmul.mubr.bf16.gmra.mrb[0].mxu0 %v440
    %v479 = vpop.f32.mrb[0].mxu0
    %v480 = vadd.f32 %v138, %v479
    %v481 = vpop.f32.mrb[0].mxu0
    %v482 = vpop.f32.mrb[0].mxu0
    %v483 = vpop.f32.mrb[0].mxu0
    %484 = vdwg.mxu0
    %485 = vrot.lane.b32.xlu0 %v214, 120
    %v486 = vpop.permute.xlu0 %485
    %487 = vrot.lane.b32.xlu0 %v214, 88
    %v488 = vpop.permute.xlu0 %487
    %v490 = vsel %vm218, %v486, 0
    %v493 = vsel %vm218, %v488, 0
    %495 = vmatprep.subr.bf16.mxu0 0
    %496 = vmatpush1.bf16.xpose.msra.mxu0 %v493
    %497 = vmatprep.subr.bf16.mxu0 0
    %498 = vmatpush1.bf16.xpose.msra.mxu0 0
    %499 = vmatprep.subr.bf16.mxu0 0
    %500 = vmatpush1.bf16.xpose.msra.mxu0 0
    %501 = vmatprep.subr.bf16.mxu0 0
    %502 = vmatpush1.bf16.xpose.msra.mxu0 0
    %503 = vmatprep.subr.bf16.mxu0 0
    %504 = vmatpush1.bf16.xpose.msra.mxu0 0
    %505 = vmatprep.subr.bf16.mxu0 0
    %506 = vmatpush1.bf16.xpose.msra.mxu0 0
    %507 = vmatprep.subr.bf16.mxu0 0
    %508 = vmatpush1.bf16.xpose.msra.mxu0 0
    %509 = vmatprep.subr.bf16.mxu0 0
    %510 = vmatpush1.bf16.xpose.msra.mxu0 0
    %511 = vmatprep.subr.bf16.mxu0 0
    %512 = vmatpush1.bf16.xpose.msra.mxu0 0
    %513 = vmatprep.subr.bf16.mxu0 0
    %514 = vmatpush1.bf16.xpose.msra.mxu0 0
    %515 = vmatprep.subr.bf16.mxu0 0
    %516 = vmatpush1.bf16.xpose.msra.mxu0 0
    %517 = vmatprep.subr.bf16.mxu0 0
    %518 = vmatpush1.bf16.xpose.msra.mxu0 0
    %519 = vmatprep.subr.bf16.mxu0 0
    %520 = vmatpush1.bf16.xpose.msra.mxu0 0
    %521 = vmatprep.subr.bf16.mxu0 0
    %522 = vmatpush1.bf16.xpose.msra.mxu0 0
    %523 = vmatprep.subr.bf16.mxu0 0
    %524 = vmatpush1.bf16.xpose.msra.mxu0 0
    %525 = vmatprep.subr.bf16.mxu0 0
    %526 = vmatpush1.bf16.xpose.msra.mxu0 0
    %527 = vmatprep.mubr.bf16.mxu0 0
    %528 = vmatmul.mubr.bf16.gmra.mrb[0].mxu0 %v490
    %v529 = vpop.f32.mrb[0].mxu0
    %v530 = vadd.f32 %v139, %v529
    %v531 = vpop.f32.mrb[0].mxu0
    %v532 = vpop.f32.mrb[0].mxu0
    %v533 = vpop.f32.mrb[0].mxu0
    %534 = vdwg.mxu0
    %v535 = vsel %vm218, %v480, -inf
    %536 = vmax.xlane.f32.xlu0 %v535
    %v537 = vpop.xlane.xlu0 %536
    %v538 = vsel %vm218, %v530, -inf
    %539 = vmax.xlane.f32.xlu0 %v538
    %v540 = vpop.xlane.xlu0 %539
    %v541 = vsub.f32 %v480, %v537
    %v542 = vsub.f32 %v530, %v540
    %v543 = vmul.f32 %v541, 1.442695
    %v544 = vpow.pop %v543
    %v545 = vmul.f32 %v542, 1.442695
    %v546 = vpow.pop %v545
    %v547 = vsel %vm218, %v544, 0.0
    %548 = vadd.xlane.f32.xlu0 %v547
    %v549 = vpop.xlane.xlu0 %548
    %v550 = vsel %vm218, %v546, 0.0
    %551 = vadd.xlane.f32.xlu0 %v550
    %v552 = vpop.xlane.xlu0 %551
    %v553 = vrcp.pop %v549
    %v554 = vrcp.pop %v552
    %v555 = vmul.f32 %v544, %v553
    %v556 = vmul.f32 %v546, %v554
    %v557 = vpack.c.bf16 %v555, %v555
    %v558 = vpack.c.bf16 %v556, %v556
    %559 = vrot.lane.b32.xlu0 %v213, 56
    %v560 = vpop.permute.xlu0 %559
    %v562 = vsel %vm218, %v557, 0
    %v565 = vsel %vm343, %v560, 0
    %567 = vmatprep.subr.bf16.mxu0 0
    %568 = vmatpush1.bf16.msra.mxu0 %v565
    %569 = vmatprep.subr.bf16.mxu0 0
    %570 = vmatpush1.bf16.msra.mxu0 0
    %571 = vmatprep.subr.bf16.mxu0 0
    %572 = vmatpush1.bf16.msra.mxu0 0
    %573 = vmatprep.subr.bf16.mxu0 0
    %574 = vmatpush1.bf16.msra.mxu0 0
    %575 = vmatprep.subr.bf16.mxu0 0
    %576 = vmatpush1.bf16.msra.mxu0 0
    %577 = vmatprep.subr.bf16.mxu0 0
    %578 = vmatpush1.bf16.msra.mxu0 0
    %579 = vmatprep.subr.bf16.mxu0 0
    %580 = vmatpush1.bf16.msra.mxu0 0
    %581 = vmatprep.subr.bf16.mxu0 0
    %582 = vmatpush1.bf16.msra.mxu0 0
    %583 = vmatprep.subr.bf16.mxu0 0
    %584 = vmatpush1.bf16.msra.mxu0 0
    %585 = vmatprep.subr.bf16.mxu0 0
    %586 = vmatpush1.bf16.msra.mxu0 0
    %587 = vmatprep.subr.bf16.mxu0 0
    %588 = vmatpush1.bf16.msra.mxu0 0
    %589 = vmatprep.subr.bf16.mxu0 0
    %590 = vmatpush1.bf16.msra.mxu0 0
    %591 = vmatprep.subr.bf16.mxu0 0
    %592 = vmatpush1.bf16.msra.mxu0 0
    %593 = vmatprep.subr.bf16.mxu0 0
    %594 = vmatpush1.bf16.msra.mxu0 0
    %595 = vmatprep.subr.bf16.mxu0 0
    %596 = vmatpush1.bf16.msra.mxu0 0
    %597 = vmatprep.subr.bf16.mxu0 0
    %598 = vmatpush1.bf16.msra.mxu0 0
    %599 = vmatprep.mubr.bf16.mxu0 0
    %600 = vmatmul.mubr.bf16.gmra.mrb[0].mxu0 %v562
    %v601 = vpop.f32.mrb[0].mxu0
    %v602 = vadd.f32 0.0, %v601
    %v603 = vpop.f32.mrb[0].mxu0
    %v604 = vpop.f32.mrb[0].mxu0
    %v605 = vpop.f32.mrb[0].mxu0
    %606 = vdwg.mxu0
    %607 = vrot.lane.b32.xlu0 %v214, 56
    %v608 = vpop.permute.xlu0 %607
    %v610 = vsel %vm218, %v558, 0
    %v613 = vsel %vm343, %v608, 0
    %615 = vmatprep.subr.bf16.mxu0 0
    %616 = vmatpush1.bf16.msra.mxu0 %v613
    %617 = vmatprep.subr.bf16.mxu0 0
    %618 = vmatpush1.bf16.msra.mxu0 0
    %619 = vmatprep.subr.bf16.mxu0 0
    %620 = vmatpush1.bf16.msra.mxu0 0
    %621 = vmatprep.subr.bf16.mxu0 0
    %622 = vmatpush1.bf16.msra.mxu0 0
    %623 = vmatprep.subr.bf16.mxu0 0
    %624 = vmatpush1.bf16.msra.mxu0 0
    %625 = vmatprep.subr.bf16.mxu0 0
    %626 = vmatpush1.bf16.msra.mxu0 0
    %627 = vmatprep.subr.bf16.mxu0 0
    %628 = vmatpush1.bf16.msra.mxu0 0
    %629 = vmatprep.subr.bf16.mxu0 0
    %630 = vmatpush1.bf16.msra.mxu0 0
    %631 = vmatprep.subr.bf16.mxu0 0
    %632 = vmatpush1.bf16.msra.mxu0 0
    %633 = vmatprep.subr.bf16.mxu0 0
    %634 = vmatpush1.bf16.msra.mxu0 0
    %635 = vmatprep.subr.bf16.mxu0 0
    %636 = vmatpush1.bf16.msra.mxu0 0
    %637 = vmatprep.subr.bf16.mxu0 0
    %638 = vmatpush1.bf16.msra.mxu0 0
    %639 = vmatprep.subr.bf16.mxu0 0
    %640 = vmatpush1.bf16.msra.mxu0 0
    %641 = vmatprep.subr.bf16.mxu0 0
    %642 = vmatpush1.bf16.msra.mxu0 0
    %643 = vmatprep.subr.bf16.mxu0 0
    %644 = vmatpush1.bf16.msra.mxu0 0
    %645 = vmatprep.subr.bf16.mxu0 0
    %646 = vmatpush1.bf16.msra.mxu0 0
    %647 = vmatprep.mubr.bf16.mxu0 0
    %648 = vmatmul.mubr.bf16.gmra.mrb[0].mxu0 %v610
    %v649 = vpop.f32.mrb[0].mxu0
    %v650 = vadd.f32 0.0, %v649
    %v651 = vpop.f32.mrb[0].mxu0
    %v652 = vpop.f32.mrb[0].mxu0
    %v653 = vpop.f32.mrb[0].mxu0
    %654 = vdwg.mxu0
    %655 = vrot.lane.b32.xlu0 %v213, 112
    %v656 = vpop.permute.xlu0 %655
    %657 = vrot.lane.b32.xlu0 %v213, 80
    %v658 = vpop.permute.xlu0 %657
    %v660 = vsel %vm218, %v656, 0
    %v663 = vsel %vm218, %v658, 0
    %665 = vmatprep.subr.bf16.mxu0 0
    %666 = vmatpush1.bf16.xpose.msra.mxu0 %v663
    %667 = vmatprep.subr.bf16.mxu0 0
    %668 = vmatpush1.bf16.xpose.msra.mxu0 0
    %669 = vmatprep.subr.bf16.mxu0 0
    %670 = vmatpush1.bf16.xpose.msra.mxu0 0
    %671 = vmatprep.subr.bf16.mxu0 0
    %672 = vmatpush1.bf16.xpose.msra.mxu0 0
    %673 = vmatprep.subr.bf16.mxu0 0
    %674 = vmatpush1.bf16.xpose.msra.mxu0 0
    %675 = vmatprep.subr.bf16.mxu0 0
    %676 = vmatpush1.bf16.xpose.msra.mxu0 0
    %677 = vmatprep.subr.bf16.mxu0 0
    %678 = vmatpush1.bf16.xpose.msra.mxu0 0
    %679 = vmatprep.subr.bf16.mxu0 0
    %680 = vmatpush1.bf16.xpose.msra.mxu0 0
    %681 = vmatprep.subr.bf16.mxu0 0
    %682 = vmatpush1.bf16.xpose.msra.mxu0 0
    %683 = vmatprep.subr.bf16.mxu0 0
    %684 = vmatpush1.bf16.xpose.msra.mxu0 0
    %685 = vmatprep.subr.bf16.mxu0 0
    %686 = vmatpush1.bf16.xpose.msra.mxu0 0
    %687 = vmatprep.subr.bf16.mxu0 0
    %688 = vmatpush1.bf16.xpose.msra.mxu0 0
    %689 = vmatprep.subr.bf16.mxu0 0
    %690 = vmatpush1.bf16.xpose.msra.mxu0 0
    %691 = vmatprep.subr.bf16.mxu0 0
    %692 = vmatpush1.bf16.xpose.msra.mxu0 0
    %693 = vmatprep.subr.bf16.mxu0 0
    %694 = vmatpush1.bf16.xpose.msra.mxu0 0
    %695 = vmatprep.subr.bf16.mxu0 0
    %696 = vmatpush1.bf16.xpose.msra.mxu0 0
    %697 = vmatprep.mubr.bf16.mxu0 0
    %698 = vmatmul.mubr.bf16.gmra.mrb[0].mxu0 %v660
    %v699 = vpop.f32.mrb[0].mxu0
    %v700 = vadd.f32 %v138, %v699
    %v701 = vpop.f32.mrb[0].mxu0
    %v702 = vpop.f32.mrb[0].mxu0
    %v703 = vpop.f32.mrb[0].mxu0
    %704 = vdwg.mxu0
    %705 = vrot.lane.b32.xlu0 %v214, 112
    %v706 = vpop.permute.xlu0 %705
    %707 = vrot.lane.b32.xlu0 %v214, 80
    %v708 = vpop.permute.xlu0 %707
    %v710 = vsel %vm218, %v706, 0
    %v713 = vsel %vm218, %v708, 0
    %715 = vmatprep.subr.bf16.mxu0 0
    %716 = vmatpush1.bf16.xpose.msra.mxu0 %v713
    %717 = vmatprep.subr.bf16.mxu0 0
    %718 = vmatpush1.bf16.xpose.msra.mxu0 0
    %719 = vmatprep.subr.bf16.mxu0 0
    %720 = vmatpush1.bf16.xpose.msra.mxu0 0
    %721 = vmatprep.subr.bf16.mxu0 0
    %722 = vmatpush1.bf16.xpose.msra.mxu0 0
    %723 = vmatprep.subr.bf16.mxu0 0
    %724 = vmatpush1.bf16.xpose.msra.mxu0 0
    %725 = vmatprep.subr.bf16.mxu0 0
    %726 = vmatpush1.bf16.xpose.msra.mxu0 0
    %727 = vmatprep.subr.bf16.mxu0 0
    %728 = vmatpush1.bf16.xpose.msra.mxu0 0
    %729 = vmatprep.subr.bf16.mxu0 0
    %730 = vmatpush1.bf16.xpose.msra.mxu0 0
    %731 = vmatprep.subr.bf16.mxu0 0
    %732 = vmatpush1.bf16.xpose.msra.mxu0 0
    %733 = vmatprep.subr.bf16.mxu0 0
    %734 = vmatpush1.bf16.xpose.msra.mxu0 0
    %735 = vmatprep.subr.bf16.mxu0 0
    %736 = vmatpush1.bf16.xpose.msra.mxu0 0
    %737 = vmatprep.subr.bf16.mxu0 0
    %738 = vmatpush1.bf16.xpose.msra.mxu0 0
    %739 = vmatprep.subr.bf16.mxu0 0
    %740 = vmatpush1.bf16.xpose.msra.mxu0 0
    %741 = vmatprep.subr.bf16.mxu0 0
    %742 = vmatpush1.bf16.xpose.msra.mxu0 0
    %743 = vmatprep.subr.bf16.mxu0 0
    %744 = vmatpush1.bf16.xpose.msra.mxu0 0
    %745 = vmatprep.subr.bf16.mxu0 0
    %746 = vmatpush1.bf16.xpose.msra.mxu0 0
    %747 = vmatprep.mubr.bf16.mxu0 0
    %748 = vmatmul.mubr.bf16.gmra.mrb[0].mxu0 %v710
    %v749 = vpop.f32.mrb[0].mxu0
    %v750 = vadd.f32 %v139, %v749
    %v751 = vpop.f32.mrb[0].mxu0
    %v752 = vpop.f32.mrb[0].mxu0
    %v753 = vpop.f32.mrb[0].mxu0
    %754 = vdwg.mxu0
    %v755 = vsel %vm218, %v700, -inf
    %756 = vmax.xlane.f32.xlu0 %v755
    %v757 = vpop.xlane.xlu0 %756
    %v758 = vsel %vm218, %v750, -inf
    %759 = vmax.xlane.f32.xlu0 %v758
    %v760 = vpop.xlane.xlu0 %759
    %v761 = vsub.f32 %v700, %v757
    %v762 = vsub.f32 %v750, %v760
    %v763 = vmul.f32 %v761, 1.442695
    %v764 = vpow.pop %v763
    %v765 = vmul.f32 %v762, 1.442695
    %v766 = vpow.pop %v765
    %v767 = vsel %vm218, %v764, 0.0
    %768 = vadd.xlane.f32.xlu0 %v767
    %v769 = vpop.xlane.xlu0 %768
    %v770 = vsel %vm218, %v766, 0.0
    %771 = vadd.xlane.f32.xlu0 %v770
    %v772 = vpop.xlane.xlu0 %771
    %v773 = vrcp.pop %v769
    %v774 = vrcp.pop %v772
    %v775 = vmul.f32 %v764, %v773
    %v776 = vmul.f32 %v766, %v774
    %v777 = vpack.c.bf16 %v775, %v775
    %v778 = vpack.c.bf16 %v776, %v776
    %779 = vrot.lane.b32.xlu0 %v213, 48
    %v780 = vpop.permute.xlu0 %779
    %v782 = vsel %vm218, %v777, 0
    %v785 = vsel %vm343, %v780, 0
    %787 = vmatprep.subr.bf16.mxu0 0
    %788 = vmatpush1.bf16.msra.mxu0 %v785
    %789 = vmatprep.subr.bf16.mxu0 0
    %790 = vmatpush1.bf16.msra.mxu0 0
    %791 = vmatprep.subr.bf16.mxu0 0
    %792 = vmatpush1.bf16.msra.mxu0 0
    %793 = vmatprep.subr.bf16.mxu0 0
    %794 = vmatpush1.bf16.msra.mxu0 0
    %795 = vmatprep.subr.bf16.mxu0 0
    %796 = vmatpush1.bf16.msra.mxu0 0
    %797 = vmatprep.subr.bf16.mxu0 0
    %798 = vmatpush1.bf16.msra.mxu0 0
    %799 = vmatprep.subr.bf16.mxu0 0
    %800 = vmatpush1.bf16.msra.mxu0 0
    %801 = vmatprep.subr.bf16.mxu0 0
    %802 = vmatpush1.bf16.msra.mxu0 0
    %803 = vmatprep.subr.bf16.mxu0 0
    %804 = vmatpush1.bf16.msra.mxu0 0
    %805 = vmatprep.subr.bf16.mxu0 0
    %806 = vmatpush1.bf16.msra.mxu0 0
    %807 = vmatprep.subr.bf16.mxu0 0
    %808 = vmatpush1.bf16.msra.mxu0 0
    %809 = vmatprep.subr.bf16.mxu0 0
    %810 = vmatpush1.bf16.msra.mxu0 0
    %811 = vmatprep.subr.bf16.mxu0 0
    %812 = vmatpush1.bf16.msra.mxu0 0
    %813 = vmatprep.subr.bf16.mxu0 0
    %814 = vmatpush1.bf16.msra.mxu0 0
    %815 = vmatprep.subr.bf16.mxu0 0
    %816 = vmatpush1.bf16.msra.mxu0 0
    %817 = vmatprep.subr.bf16.mxu0 0
    %818 = vmatpush1.bf16.msra.mxu0 0
    %819 = vmatprep.mubr.bf16.mxu0 0
    %820 = vmatmul.mubr.bf16.gmra.mrb[0].mxu0 %v782
    %v821 = vpop.f32.mrb[0].mxu0
    %v822 = vadd.f32 0.0, %v821
    %v823 = vpop.f32.mrb[0].mxu0
    %v824 = vpop.f32.mrb[0].mxu0
    %v825 = vpop.f32.mrb[0].mxu0
    %826 = vdwg.mxu0
    %827 = vrot.lane.b32.xlu0 %v214, 48
    %v828 = vpop.permute.xlu0 %827
    %v830 = vsel %vm218, %v778, 0
    %v833 = vsel %vm343, %v828, 0
    %835 = vmatprep.subr.bf16.mxu0 0
    %836 = vmatpush1.bf16.msra.mxu0 %v833
    %837 = vmatprep.subr.bf16.mxu0 0
    %838 = vmatpush1.bf16.msra.mxu0 0
    %839 = vmatprep.subr.bf16.mxu0 0
    %840 = vmatpush1.bf16.msra.mxu0 0
    %841 = vmatprep.subr.bf16.mxu0 0
    %842 = vmatpush1.bf16.msra.mxu0 0
    %843 = vmatprep.subr.bf16.mxu0 0
    %844 = vmatpush1.bf16.msra.mxu0 0
    %845 = vmatprep.subr.bf16.mxu0 0
    %846 = vmatpush1.bf16.msra.mxu0 0
    %847 = vmatprep.subr.bf16.mxu0 0
    %848 = vmatpush1.bf16.msra.mxu0 0
    %849 = vmatprep.subr.bf16.mxu0 0
    %850 = vmatpush1.bf16.msra.mxu0 0
    %851 = vmatprep.subr.bf16.mxu0 0
    %852 = vmatpush1.bf16.msra.mxu0 0
    %853 = vmatprep.subr.bf16.mxu0 0
    %854 = vmatpush1.bf16.msra.mxu0 0
    %855 = vmatprep.subr.bf16.mxu0 0
    %856 = vmatpush1.bf16.msra.mxu0 0
    %857 = vmatprep.subr.bf16.mxu0 0
    %858 = vmatpush1.bf16.msra.mxu0 0
    %859 = vmatprep.subr.bf16.mxu0 0
    %860 = vmatpush1.bf16.msra.mxu0 0
    %861 = vmatprep.subr.bf16.mxu0 0
    %862 = vmatpush1.bf16.msra.mxu0 0
    %863 = vmatprep.subr.bf16.mxu0 0
    %864 = vmatpush1.bf16.msra.mxu0 0
    %865 = vmatprep.subr.bf16.mxu0 0
    %866 = vmatpush1.bf16.msra.mxu0 0
    %867 = vmatprep.mubr.bf16.mxu0 0
    %868 = vmatmul.mubr.bf16.gmra.mrb[0].mxu0 %v830
    %v869 = vpop.f32.mrb[0].mxu0
    %v870 = vadd.f32 0.0, %v869
    %v871 = vpop.f32.mrb[0].mxu0
    %v872 = vpop.f32.mrb[0].mxu0
    %v873 = vpop.f32.mrb[0].mxu0
    %874 = vdwg.mxu0
    %875 = vrot.lane.b32.xlu0 %v213, 104
    %v876 = vpop.permute.xlu0 %875
    %877 = vrot.lane.b32.xlu0 %v213, 72
    %v878 = vpop.permute.xlu0 %877
    %v880 = vsel %vm218, %v876, 0
    %v883 = vsel %vm218, %v878, 0
    %885 = vmatprep.subr.bf16.mxu0 0
    %886 = vmatpush1.bf16.xpose.msra.mxu0 %v883
    %887 = vmatprep.subr.bf16.mxu0 0
    %888 = vmatpush1.bf16.xpose.msra.mxu0 0
    %889 = vmatprep.subr.bf16.mxu0 0
    %890 = vmatpush1.bf16.xpose.msra.mxu0 0
    %891 = vmatprep.subr.bf16.mxu0 0
    %892 = vmatpush1.bf16.xpose.msra.mxu0 0
    %893 = vmatprep.subr.bf16.mxu0 0
    %894 = vmatpush1.bf16.xpose.msra.mxu0 0
    %895 = vmatprep.subr.bf16.mxu0 0
    %896 = vmatpush1.bf16.xpose.msra.mxu0 0
    %897 = vmatprep.subr.bf16.mxu0 0
    %898 = vmatpush1.bf16.xpose.msra.mxu0 0
    %899 = vmatprep.subr.bf16.mxu0 0
    %900 = vmatpush1.bf16.xpose.msra.mxu0 0
    %901 = vmatprep.subr.bf16.mxu0 0
    %902 = vmatpush1.bf16.xpose.msra.mxu0 0
    %903 = vmatprep.subr.bf16.mxu0 0
    %904 = vmatpush1.bf16.xpose.msra.mxu0 0
    %905 = vmatprep.subr.bf16.mxu0 0
    %906 = vmatpush1.bf16.xpose.msra.mxu0 0
    %907 = vmatprep.subr.bf16.mxu0 0
    %908 = vmatpush1.bf16.xpose.msra.mxu0 0
    %909 = vmatprep.subr.bf16.mxu0 0
    %910 = vmatpush1.bf16.xpose.msra.mxu0 0
    %911 = vmatprep.subr.bf16.mxu0 0
    %912 = vmatpush1.bf16.xpose.msra.mxu0 0
    %913 = vmatprep.subr.bf16.mxu0 0
    %914 = vmatpush1.bf16.xpose.msra.mxu0 0
    %915 = vmatprep.subr.bf16.mxu0 0
    %916 = vmatpush1.bf16.xpose.msra.mxu0 0
    %917 = vmatprep.mubr.bf16.mxu0 0
    %918 = vmatmul.mubr.bf16.gmra.mrb[0].mxu0 %v880
    %v919 = vpop.f32.mrb[0].mxu0
    %v920 = vadd.f32 %v138, %v919
    %v921 = vpop.f32.mrb[0].mxu0
    %v922 = vpop.f32.mrb[0].mxu0
    %v923 = vpop.f32.mrb[0].mxu0
    %924 = vdwg.mxu0
    %925 = vrot.lane.b32.xlu0 %v214, 104
    %v926 = vpop.permute.xlu0 %925
    %927 = vrot.lane.b32.xlu0 %v214, 72
    %v928 = vpop.permute.xlu0 %927
    %v930 = vsel %vm218, %v926, 0
    %v933 = vsel %vm218, %v928, 0
    %935 = vmatprep.subr.bf16.mxu0 0
    %936 = vmatpush1.bf16.xpose.msra.mxu0 %v933
    %937 = vmatprep.subr.bf16.mxu0 0
    %938 = vmatpush1.bf16.xpose.msra.mxu0 0
    %939 = vmatprep.subr.bf16.mxu0 0
    %940 = vmatpush1.bf16.xpose.msra.mxu0 0
    %941 = vmatprep.subr.bf16.mxu0 0
    %942 = vmatpush1.bf16.xpose.msra.mxu0 0
    %943 = vmatprep.subr.bf16.mxu0 0
    %944 = vmatpush1.bf16.xpose.msra.mxu0 0
    %945 = vmatprep.subr.bf16.mxu0 0
    %946 = vmatpush1.bf16.xpose.msra.mxu0 0
    %947 = vmatprep.subr.bf16.mxu0 0
    %948 = vmatpush1.bf16.xpose.msra.mxu0 0
    %949 = vmatprep.subr.bf16.mxu0 0
    %950 = vmatpush1.bf16.xpose.msra.mxu0 0
    %951 = vmatprep.subr.bf16.mxu0 0
    %952 = vmatpush1.bf16.xpose.msra.mxu0 0
    %953 = vmatprep.subr.bf16.mxu0 0
    %954 = vmatpush1.bf16.xpose.msra.mxu0 0
    %955 = vmatprep.subr.bf16.mxu0 0
    %956 = vmatpush1.bf16.xpose.msra.mxu0 0
    %957 = vmatprep.subr.bf16.mxu0 0
    %958 = vmatpush1.bf16.xpose.msra.mxu0 0
    %959 = vmatprep.subr.bf16.mxu0 0
    %960 = vmatpush1.bf16.xpose.msra.mxu0 0
    %961 = vmatprep.subr.bf16.mxu0 0
    %962 = vmatpush1.bf16.xpose.msra.mxu0 0
    %963 = vmatprep.subr.bf16.mxu0 0
    %964 = vmatpush1.bf16.xpose.msra.mxu0 0
    %965 = vmatprep.subr.bf16.mxu0 0
    %966 = vmatpush1.bf16.xpose.msra.mxu0 0
    %967 = vmatprep.mubr.bf16.mxu0 0
    %968 = vmatmul.mubr.bf16.gmra.mrb[0].mxu0 %v930
    %v969 = vpop.f32.mrb[0].mxu0
    %v970 = vadd.f32 %v139, %v969
    %v971 = vpop.f32.mrb[0].mxu0
    %v972 = vpop.f32.mrb[0].mxu0
    %v973 = vpop.f32.mrb[0].mxu0
    %974 = vdwg.mxu0
    %v975 = vsel %vm218, %v920, -inf
    %976 = vmax.xlane.f32.xlu0 %v975
    %v977 = vpop.xlane.xlu0 %976
    %v978 = vsel %vm218, %v970, -inf
    %979 = vmax.xlane.f32.xlu0 %v978
    %v980 = vpop.xlane.xlu0 %979
    %v981 = vsub.f32 %v920, %v977
    %v982 = vsub.f32 %v970, %v980
    %v983 = vmul.f32 %v981, 1.442695
    %v984 = vpow.pop %v983
    %v985 = vmul.f32 %v982, 1.442695
    %v986 = vpow.pop %v985
    %v987 = vsel %vm218, %v984, 0.0
    %988 = vadd.xlane.f32.xlu0 %v987
    %v989 = vpop.xlane.xlu0 %988
    %v990 = vsel %vm218, %v986, 0.0
    %991 = vadd.xlane.f32.xlu0 %v990
    %v992 = vpop.xlane.xlu0 %991
    %v993 = vrcp.pop %v989
    %v994 = vrcp.pop %v992
    %v995 = vmul.f32 %v984, %v993
    %v996 = vmul.f32 %v986, %v994
    %v997 = vpack.c.bf16 %v995, %v995
    %v998 = vpack.c.bf16 %v996, %v996
    %999 = vrot.lane.b32.xlu0 %v213, 40
    %v1000 = vpop.permute.xlu0 %999
    %v1002 = vsel %vm218, %v997, 0
    %v1005 = vsel %vm343, %v1000, 0
    %1007 = vmatprep.subr.bf16.mxu0 0
    %1008 = vmatpush1.bf16.msra.mxu0 %v1005
    %1009 = vmatprep.subr.bf16.mxu0 0
    %1010 = vmatpush1.bf16.msra.mxu0 0
    %1011 = vmatprep.subr.bf16.mxu0 0
    %1012 = vmatpush1.bf16.msra.mxu0 0
    %1013 = vmatprep.subr.bf16.mxu0 0
    %1014 = vmatpush1.bf16.msra.mxu0 0
    %1015 = vmatprep.subr.bf16.mxu0 0
    %1016 = vmatpush1.bf16.msra.mxu0 0
    %1017 = vmatprep.subr.bf16.mxu0 0
    %1018 = vmatpush1.bf16.msra.mxu0 0
    %1019 = vmatprep.subr.bf16.mxu0 0
    %1020 = vmatpush1.bf16.msra.mxu0 0
    %1021 = vmatprep.subr.bf16.mxu0 0
    %1022 = vmatpush1.bf16.msra.mxu0 0
    %1023 = vmatprep.subr.bf16.mxu0 0
    %1024 = vmatpush1.bf16.msra.mxu0 0
    %1025 = vmatprep.subr.bf16.mxu0 0
    %1026 = vmatpush1.bf16.msra.mxu0 0
    %1027 = vmatprep.subr.bf16.mxu0 0
    %1028 = vmatpush1.bf16.msra.mxu0 0
    %1029 = vmatprep.subr.bf16.mxu0 0
    %1030 = vmatpush1.bf16.msra.mxu0 0
    %1031 = vmatprep.subr.bf16.mxu0 0
    %1032 = vmatpush1.bf16.msra.mxu0 0
    %1033 = vmatprep.subr.bf16.mxu0 0
    %1034 = vmatpush1.bf16.msra.mxu0 0
    %1035 = vmatprep.subr.bf16.mxu0 0
    %1036 = vmatpush1.bf16.msra.mxu0 0
    %1037 = vmatprep.subr.bf16.mxu0 0
    %1038 = vmatpush1.bf16.msra.mxu0 0
    %1039 = vmatprep.mubr.bf16.mxu0 0
    %1040 = vmatmul.mubr.bf16.gmra.mrb[0].mxu0 %v1002
    %v1041 = vpop.f32.mrb[0].mxu0
    %v1042 = vadd.f32 0.0, %v1041
    %v1043 = vpop.f32.mrb[0].mxu0
    %v1044 = vpop.f32.mrb[0].mxu0
    %v1045 = vpop.f32.mrb[0].mxu0
    %1046 = vdwg.mxu0
    %1047 = vrot.lane.b32.xlu0 %v214, 40
    %v1048 = vpop.permute.xlu0 %1047
    %v1050 = vsel %vm218, %v998, 0
    %v1053 = vsel %vm343, %v1048, 0
    %1055 = vmatprep.subr.bf16.mxu0 0
    %1056 = vmatpush1.bf16.msra.mxu0 %v1053
    %1057 = vmatprep.subr.bf16.mxu0 0
    %1058 = vmatpush1.bf16.msra.mxu0 0
    %1059 = vmatprep.subr.bf16.mxu0 0
    %1060 = vmatpush1.bf16.msra.mxu0 0
    %1061 = vmatprep.subr.bf16.mxu0 0
    %1062 = vmatpush1.bf16.msra.mxu0 0
    %1063 = vmatprep.subr.bf16.mxu0 0
    %1064 = vmatpush1.bf16.msra.mxu0 0
    %1065 = vmatprep.subr.bf16.mxu0 0
    %1066 = vmatpush1.bf16.msra.mxu0 0
    %1067 = vmatprep.subr.bf16.mxu0 0
    %1068 = vmatpush1.bf16.msra.mxu0 0
    %1069 = vmatprep.subr.bf16.mxu0 0
    %1070 = vmatpush1.bf16.msra.mxu0 0
    %1071 = vmatprep.subr.bf16.mxu0 0
    %1072 = vmatpush1.bf16.msra.mxu0 0
    %1073 = vmatprep.subr.bf16.mxu0 0
    %1074 = vmatpush1.bf16.msra.mxu0 0
    %1075 = vmatprep.subr.bf16.mxu0 0
    %1076 = vmatpush1.bf16.msra.mxu0 0
    %1077 = vmatprep.subr.bf16.mxu0 0
    %1078 = vmatpush1.bf16.msra.mxu0 0
    %1079 = vmatprep.subr.bf16.mxu0 0
    %1080 = vmatpush1.bf16.msra.mxu0 0
    %1081 = vmatprep.subr.bf16.mxu0 0
    %1082 = vmatpush1.bf16.msra.mxu0 0
    %1083 = vmatprep.subr.bf16.mxu0 0
    %1084 = vmatpush1.bf16.msra.mxu0 0
    %1085 = vmatprep.subr.bf16.mxu0 0
    %1086 = vmatpush1.bf16.msra.mxu0 0
    %1087 = vmatprep.mubr.bf16.mxu0 0
    %1088 = vmatmul.mubr.bf16.gmra.mrb[0].mxu0 %v1050
    %v1089 = vpop.f32.mrb[0].mxu0
    %v1090 = vadd.f32 0.0, %v1089
    %v1091 = vpop.f32.mrb[0].mxu0
    %v1092 = vpop.f32.mrb[0].mxu0
    %v1093 = vpop.f32.mrb[0].mxu0
    %1094 = vdwg.mxu0
    %1097 = vrot.lane.b32.xlu0 %v602, 8
    %v1098 = vpop.permute.xlu0 %1097
    %1099 = vrot.lane.b32.xlu0 %v650, 8
    %v1100 = vpop.permute.xlu0 %1099
    %1105 = vrot.lane.b32.xlu0 %v822, 16
    %v1106 = vpop.permute.xlu0 %1105
    %1107 = vrot.lane.b32.xlu0 %v870, 16
    %v1108 = vpop.permute.xlu0 %1107
    %1113 = vrot.lane.b32.xlu0 %v1042, 24
    %v1114 = vpop.permute.xlu0 %1113
    %1115 = vrot.lane.b32.xlu0 %v1090, 24
    %v1116 = vpop.permute.xlu0 %1115
    %v1119 = vsel %vm218, %v382, %v1098
    %v1120 = vsel %vm218, %v430, %v1100
    %vm1121 = vcmask 130048
    %v1122 = vsel %vm1121, %v1119, %v1106
    %v1123 = vsel %vm1121, %v1120, %v1108
    %vm1124 = vcmask 195584
    %v1125 = vsel %vm1124, %v1122, %v1114
    %v1126 = vsel %vm1124, %v1123, %v1116
    %v1127 = vpack.c.bf16 %v1126, %v1125
    %v1128 = vld [vmem:[%s4] sm:$0xf]
    %v1129 = vld [vmem:[%s4 + $0x4] sm:$0xf]
    %v1130 = vld [vmem:[%s4 + $0x8] sm:$0xf]
    %v1131 = vld [vmem:[%s4 + $0xc] sm:$0xf]
    %v1132 = vld [vmem:[%s5] sm:$0x1]
    %v1134 = vlaneseq
    %v1135 = vshrl.u32 %v1134, 7
    %v1136 = vsub.s32 0, %v1135
    %v1137 = vrot.slane %v1132, %v1136
    %v1143 = vunpack.c.l.b16 %v1128
    %v1144 = vunpack.c.l.b16 %v1129
    %v1145 = vunpack.c.l.b16 %v1130
    %v1146 = vunpack.c.l.b16 %v1131
    %v1147 = vpack.c.b16 %v1144, %v1143
    %v1148 = vpack.c.b16 %v1146, %v1145
    %v1152 = vsel %vm168, %v1127, 0
    %1154 = vmatprep.subr.bf16.mxu0 0
    %1155 = vmatpush1.bf16.msra.mxu0 %v1147
    %1156 = vmatprep.subr.bf16.mxu0 0
    %1157 = vmatpush1.bf16.msra.mxu0 %v1148
    %1158 = vmatprep.subr.bf16.mxu0 0
    %1159 = vmatpush1.bf16.msra.mxu0 0
    %1160 = vmatprep.subr.bf16.mxu0 0
    %1161 = vmatpush1.bf16.msra.mxu0 0
    %1162 = vmatprep.subr.bf16.mxu0 0
    %1163 = vmatpush1.bf16.msra.mxu0 0
    %1164 = vmatprep.subr.bf16.mxu0 0
    %1165 = vmatpush1.bf16.msra.mxu0 0
    %1166 = vmatprep.subr.bf16.mxu0 0
    %1167 = vmatpush1.bf16.msra.mxu0 0
    %1168 = vmatprep.subr.bf16.mxu0 0
    %1169 = vmatpush1.bf16.msra.mxu0 0
    %1170 = vmatprep.subr.bf16.mxu0 0
    %1171 = vmatpush1.bf16.msra.mxu0 0
    %1172 = vmatprep.subr.bf16.mxu0 0
    %1173 = vmatpush1.bf16.msra.mxu0 0
    %1174 = vmatprep.subr.bf16.mxu0 0
    %1175 = vmatpush1.bf16.msra.mxu0 0
    %1176 = vmatprep.subr.bf16.mxu0 0
    %1177 = vmatpush1.bf16.msra.mxu0 0
    %1178 = vmatprep.subr.bf16.mxu0 0
    %1179 = vmatpush1.bf16.msra.mxu0 0
    %1180 = vmatprep.subr.bf16.mxu0 0
    %1181 = vmatpush1.bf16.msra.mxu0 0
    %1182 = vmatprep.subr.bf16.mxu0 0
    %1183 = vmatpush1.bf16.msra.mxu0 0
    %1184 = vmatprep.subr.bf16.mxu0 0
    %1185 = vmatpush1.bf16.msra.mxu0 0
    %1186 = vmatprep.mubr.bf16.mxu0 0
    %1187 = vmatmul.mubr.bf16.gmra.mrb[0].mxu0 %v1152
    %v1188 = vpop.f32.mrb[0].mxu0
    %v1189 = vadd.f32 %v1137, %v1188
    %v1190 = vpop.f32.mrb[0].mxu0
    %v1191 = vpop.f32.mrb[0].mxu0
    %v1192 = vadd.f32 %v1137, %v1191
    %v1193 = vpop.f32.mrb[0].mxu0
    %1194 = vdwg.mxu0
    %v1195 = vadd.f32 %v142, %v1189
    %v1196 = vadd.f32 %v143, %v1192
    %v1197 = vld [vmem:[%s6] sm:$0x1]
    %v1198 = vld [vmem:[%s7] sm:$0x1]
    %v1199 = vsel %vm168, %v1195, 0.0
    %1200 = vadd.xlane.f32.xlu0 %v1199
    %v1201 = vpop.xlane.xlu0 %1200
    %v1202 = vsel %vm168, %v1196, 0.0
    %1203 = vadd.xlane.f32.xlu0 %v1202
    %v1204 = vpop.xlane.xlu0 %1203
    %v1205 = vrcp.pop 32.0
    %v1206 = vmul.f32 %v1201, %v1205
    %v1207 = vmul.f32 %v1204, %v1205
    %v1208 = vsub.f32 %v1195, %v1206
    %v1209 = vsub.f32 %v1196, %v1207
    %v1210 = vmul.f32 %v1208, %v1208
    %v1211 = vmul.f32 %v1209, %v1209
    %v1212 = vsel %vm168, %v1210, 0.0
    %1213 = vadd.xlane.f32.xlu0 %v1212
    %v1214 = vpop.xlane.xlu0 %1213
    %v1215 = vsel %vm168, %v1211, 0.0
    %1216 = vadd.xlane.f32.xlu0 %v1215
    %v1217 = vpop.xlane.xlu0 %1216
    %v1218 = vmul.f32 %v1214, %v1205
    %v1219 = vmul.f32 %v1217, %v1205
    %v1220 = vadd.f32 %v1218, 1e-05
    %v1221 = vadd.f32 %v1219, 1e-05
    %v1222 = vrsqrt.pop %v1220
    %v1223 = vrsqrt.pop %v1221
    %v1224 = vmul.f32 %v1208, %v1222
    %v1225 = vmul.f32 %v1209, %v1223
    %v1227 = vlaneseq
    %v1228 = vshrl.u32 %v1227, 7
    %v1229 = vsub.s32 0, %v1228
    %v1230 = vrot.slane %v1197, %v1229
    %v1232 = vmul.f32 %v1224, %v1230
    %v1233 = vmul.f32 %v1225, %v1230
    %v1235 = vlaneseq
    %v1236 = vshrl.u32 %v1235, 7
    %v1237 = vsub.s32 0, %v1236
    %v1238 = vrot.slane %v1198, %v1237
    %v1240 = vadd.f32 %v1232, %v1238
    %v1241 = vadd.f32 %v1233, %v1238
    %v1242 = vpack.c.bf16 %v1241, %v1240
    %v1243 = vld [vmem:[%s8] sm:$0xf]
    %v1244 = vld [vmem:[%s8 + $0x4] sm:$0xf]
    %v1245 = vld [vmem:[%s8 + $0x8] sm:$0xf]
    %v1246 = vld [vmem:[%s8 + $0xc] sm:$0xf]
    %v1247 = vld [vmem:[%s9] sm:$0x1]
    %v1249 = vlaneseq
    %v1250 = vshrl.u32 %v1249, 7
    %v1251 = vsub.s32 0, %v1250
    %v1252 = vrot.slane %v1247, %v1251
    %v1258 = vunpack.c.l.b16 %v1243
    %v1259 = vunpack.c.l.b16 %v1244
    %v1260 = vunpack.c.l.b16 %v1245
    %v1261 = vunpack.c.l.b16 %v1246
    %v1262 = vpack.c.b16 %v1259, %v1258
    %v1263 = vpack.c.b16 %v1261, %v1260
    %v1267 = vsel %vm168, %v1242, 0
    %1269 = vmatprep.subr.bf16.mxu0 0
    %1270 = vmatpush1.bf16.msra.mxu0 %v1262
    %1271 = vmatprep.subr.bf16.mxu0 0
    %1272 = vmatpush1.bf16.msra.mxu0 %v1263
    %1273 = vmatprep.subr.bf16.mxu0 0
    %1274 = vmatpush1.bf16.msra.mxu0 0
    %1275 = vmatprep.subr.bf16.mxu0 0
    %1276 = vmatpush1.bf16.msra.mxu0 0
    %1277 = vmatprep.subr.bf16.mxu0 0
    %1278 = vmatpush1.bf16.msra.mxu0 0
    %1279 = vmatprep.subr.bf16.mxu0 0
    %1280 = vmatpush1.bf16.msra.mxu0 0
    %1281 = vmatprep.subr.bf16.mxu0 0
    %1282 = vmatpush1.bf16.msra.mxu0 0
    %1283 = vmatprep.subr.bf16.mxu0 0
    %1284 = vmatpush1.bf16.msra.mxu0 0
    %1285 = vmatprep.subr.bf16.mxu0 0
    %1286 = vmatpush1.bf16.msra.mxu0 0
    %1287 = vmatprep.subr.bf16.mxu0 0
    %1288 = vmatpush1.bf16.msra.mxu0 0
    %1289 = vmatprep.subr.bf16.mxu0 0
    %1290 = vmatpush1.bf16.msra.mxu0 0
    %1291 = vmatprep.subr.bf16.mxu0 0
    %1292 = vmatpush1.bf16.msra.mxu0 0
    %1293 = vmatprep.subr.bf16.mxu0 0
    %1294 = vmatpush1.bf16.msra.mxu0 0
    %1295 = vmatprep.subr.bf16.mxu0 0
    %1296 = vmatpush1.bf16.msra.mxu0 0
    %1297 = vmatprep.subr.bf16.mxu0 0
    %1298 = vmatpush1.bf16.msra.mxu0 0
    %1299 = vmatprep.subr.bf16.mxu0 0
    %1300 = vmatpush1.bf16.msra.mxu0 0
    %1301 = vmatprep.mubr.bf16.mxu0 0
    %1302 = vmatmul.mubr.bf16.gmra.mrb[0].mxu0 %v1267
    %v1303 = vpop.f32.mrb[0].mxu0
    %v1304 = vadd.f32 %v1252, %v1303
    %v1305 = vpop.f32.mrb[0].mxu0
    %v1306 = vpop.f32.mrb[0].mxu0
    %v1307 = vadd.f32 %v1252, %v1306
    %v1308 = vpop.f32.mrb[0].mxu0
    %1309 = vdwg.mxu0
    %v1310 = vmax.f32 %v1304, 0.0
    %v1311 = vmax.f32 %v1307, 0.0
    %v1312 = vpack.c.bf16 %v1311, %v1310
    %v1313 = vld [vmem:[%s10] sm:$0xf]
    %v1314 = vld [vmem:[%s10 + $0x4] sm:$0xf]
    %v1315 = vld [vmem:[%s10 + $0x8] sm:$0xf]
    %v1316 = vld [vmem:[%s10 + $0xc] sm:$0xf]
    %v1317 = vld [vmem:[%s10 + $0x10] sm:$0xf]
    %v1318 = vld [vmem:[%s10 + $0x14] sm:$0xf]
    %v1319 = vld [vmem:[%s10 + $0x18] sm:$0xf]
    %v1320 = vld [vmem:[%s10 + $0x1c] sm:$0xf]
    %v1321 = vld [vmem:[%s11] sm:$0x1]
    %v1323 = vlaneseq
    %v1324 = vshrl.u32 %v1323, 7
    %v1325 = vsub.s32 0, %v1324
    %v1326 = vrot.slane %v1321, %v1325
    %v1336 = vunpack.c.l.b16 %v1313
    %v1337 = vunpack.c.l.b16 %v1314
    %v1338 = vunpack.c.l.b16 %v1315
    %v1339 = vunpack.c.l.b16 %v1316
    %v1340 = vunpack.c.l.b16 %v1317
    %v1341 = vunpack.c.l.b16 %v1318
    %v1342 = vunpack.c.l.b16 %v1319
    %v1343 = vunpack.c.l.b16 %v1320
    %v1344 = vpack.c.b16 %v1337, %v1336
    %v1345 = vpack.c.b16 %v1339, %v1338
    %v1346 = vpack.c.b16 %v1341, %v1340
    %v1347 = vpack.c.b16 %v1343, %v1342
    %vm1352 = vcmask 523264
    %v1354 = vsel %vm1352, %v1312, 0
    %1356 = vmatprep.subr.bf16.mxu0 0
    %1357 = vmatpush1.bf16.msra.mxu0 %v1344
    %1358 = vmatprep.subr.bf16.mxu0 0
    %1359 = vmatpush1.bf16.msra.mxu0 %v1345
    %1360 = vmatprep.subr.bf16.mxu0 0
    %1361 = vmatpush1.bf16.msra.mxu0 %v1346
    %1362 = vmatprep.subr.bf16.mxu0 0
    %1363 = vmatpush1.bf16.msra.mxu0 %v1347
    %1364 = vmatprep.subr.bf16.mxu0 0
    %1365 = vmatpush1.bf16.msra.mxu0 0
    %1366 = vmatprep.subr.bf16.mxu0 0
    %1367 = vmatpush1.bf16.msra.mxu0 0
    %1368 = vmatprep.subr.bf16.mxu0 0
    %1369 = vmatpush1.bf16.msra.mxu0 0
    %1370 = vmatprep.subr.bf16.mxu0 0
    %1371 = vmatpush1.bf16.msra.mxu0 0
    %1372 = vmatprep.subr.bf16.mxu0 0
    %1373 = vmatpush1.bf16.msra.mxu0 0
    %1374 = vmatprep.subr.bf16.mxu0 0
    %1375 = vmatpush1.bf16.msra.mxu0 0
    %1376 = vmatprep.subr.bf16.mxu0 0
    %1377 = vmatpush1.bf16.msra.mxu0 0
    %1378 = vmatprep.subr.bf16.mxu0 0
    %1379 = vmatpush1.bf16.msra.mxu0 0
    %1380 = vmatprep.subr.bf16.mxu0 0
    %1381 = vmatpush1.bf16.msra.mxu0 0
    %1382 = vmatprep.subr.bf16.mxu0 0
    %1383 = vmatpush1.bf16.msra.mxu0 0
    %1384 = vmatprep.subr.bf16.mxu0 0
    %1385 = vmatpush1.bf16.msra.mxu0 0
    %1386 = vmatprep.subr.bf16.mxu0 0
    %1387 = vmatpush1.bf16.msra.mxu0 0
    %1388 = vmatprep.mubr.bf16.mxu0 0
    %1389 = vmatmul.mubr.bf16.gmra.mrb[0].mxu0 %v1354
    %v1390 = vpop.f32.mrb[0].mxu0
    %v1391 = vadd.f32 %v1326, %v1390
    %v1392 = vpop.f32.mrb[0].mxu0
    %v1393 = vpop.f32.mrb[0].mxu0
    %v1394 = vadd.f32 %v1326, %v1393
    %v1395 = vpop.f32.mrb[0].mxu0
    %1396 = vdwg.mxu0
    %v1397 = vadd.f32 %v1240, %v1391
    %v1398 = vadd.f32 %v1241, %v1394
    %v1399 = vld [vmem:[%s12] sm:$0x1]
    %v1400 = vld [vmem:[%s13] sm:$0x1]
    %v1401 = vsel %vm168, %v1397, 0.0
    %1402 = vadd.xlane.f32.xlu0 %v1401
    %v1403 = vpop.xlane.xlu0 %1402
    %v1404 = vsel %vm168, %v1398, 0.0
    %1405 = vadd.xlane.f32.xlu0 %v1404
    %v1406 = vpop.xlane.xlu0 %1405
    %v1407 = vmul.f32 %v1403, %v1205
    %v1408 = vmul.f32 %v1406, %v1205
    %v1409 = vsub.f32 %v1397, %v1407
    %v1410 = vsub.f32 %v1398, %v1408
    %v1411 = vmul.f32 %v1409, %v1409
    %v1412 = vmul.f32 %v1410, %v1410
    %v1413 = vsel %vm168, %v1411, 0.0
    %1414 = vadd.xlane.f32.xlu0 %v1413
    %v1415 = vpop.xlane.xlu0 %1414
    %v1416 = vsel %vm168, %v1412, 0.0
    %1417 = vadd.xlane.f32.xlu0 %v1416
    %v1418 = vpop.xlane.xlu0 %1417
    %v1419 = vmul.f32 %v1415, %v1205
    %v1420 = vmul.f32 %v1418, %v1205
    %v1421 = vadd.f32 %v1419, 1e-05
    %v1422 = vadd.f32 %v1420, 1e-05
    %v1423 = vrsqrt.pop %v1421
    %v1424 = vrsqrt.pop %v1422
    %v1425 = vmul.f32 %v1409, %v1423
    %v1426 = vmul.f32 %v1410, %v1424
    %v1428 = vlaneseq
    %v1429 = vshrl.u32 %v1428, 7
    %v1430 = vsub.s32 0, %v1429
    %v1431 = vrot.slane %v1399, %v1430
    %v1433 = vmul.f32 %v1425, %v1431
    %v1434 = vmul.f32 %v1426, %v1431
    %v1436 = vlaneseq
    %v1437 = vshrl.u32 %v1436, 7
    %v1438 = vsub.s32 0, %v1437
    %v1439 = vrot.slane %v1400, %v1438
    %v1441 = vadd.f32 %v1433, %v1439
    %v1442 = vadd.f32 %v1434, %v1439
    %1443 = vst.msk [vmem:[#allocation7] sm:$0xff] %vm168, %v1441
    %1444 = vst.msk [vmem:[#allocation7 + $0x8] sm:$0xff] %vm168, %v1442
    // Predicated region
    $region66: #{tpu_custom_call.1} parent=1 // pred_check
      _
    $region67: #{tpu_custom_call.1} parent=1 // pred_check_branch
      %1446 = sbr.rel (0) target = $region69
    $region68: #{tpu_custom_call.1} parent=1 // pred_region
      %s1448 = ssub.s32 256, 256
      %1449 = vsyncadd [#allocation4], %s1448
      %s1450 = sshll.u32 [#allocation7], 4
      %s1451 = int_to_ptr.vmem [resolvable:$true] %s1450
      %1456 = dma.vmem_to_hbm [thread:$0]  %s1451, 256, %s14, [#allocation4], 128, 128, 8
    $region69: #{tpu_custom_call.1} parent=1 // pred_fallthru
      _
    // Predicated region
    $region70: #{tpu_custom_call.1} parent=1 // pred_check
      _
    $region71: #{tpu_custom_call.1} parent=1 // pred_check_branch
      %1458 = sbr.rel (0) target = $region73
    $region72: #{tpu_custom_call.1} parent=1 // pred_region
      %1459 = dma.done [#allocation4], 256
    $region73: #{tpu_custom_call.1} parent=1 // pred_fallthru
      _
    %1460 = vsyncpa [#allocation3], 1
    %1461 = vsyncpa [#allocation6], 1
    %1462 = vsyncpa [#allocation4], 1

</llo_original>
